<compile_context>
chip_gen: v7x
topology: tpu7x:2x2x1
jax: 0.10.0
libtpu: 0.0.40
codegen_flags: <defaults>
</compile_context>

<pallas_src>
import jax
import jax.numpy as jnp
from jax.experimental import pallas as pl
from jax.experimental.pallas import tpu as pltpu


def _make_pool_kernel(S, ts, needs_mask):
    """Per-(row-tile, spatial-tile) partial sum over the spatial (lane) axis, f32 accum."""

    def kernel(x_ref, part_ref):
        x = x_ref[...].astype(jnp.float32)            # native-dtype load, f32 accumulate
        if needs_mask:                                # ragged spatial tail
            lane = jax.lax.broadcasted_iota(jnp.int32, x.shape, 1)
            valid = (pl.program_id(1) * ts + lane) < S
            x = jnp.where(valid, x, 0.0)
        part_ref[0] = jnp.sum(x, axis=-1, keepdims=True)       # (rt, 1)

    return kernel


def _make_scale_kernel(S):
    """out = x * gate with the squeeze-excite FC fused (recomputed per step, ~free)."""
    inv_S = 1.0 / float(S)

    def kernel(part_ref, w1b_ref, w2b_ref, x_ref, o_ref):
        # Finalize pooled mean from per-tile partial sums: (NC, 1) f32.
        avg = jnp.sum(part_ref[...], axis=0) * inv_S
        # Block-diagonal weights keep the per-sample FC in the flat (N*C,) row layout.
        h = jnp.maximum(
            jnp.dot(w1b_ref[...], avg, preferred_element_type=jnp.float32), 0.0)
        g = jax.nn.sigmoid(
            jnp.dot(w2b_ref[...], h, preferred_element_type=jnp.float32))    # (rt, 1)
        o_ref[...] = (x_ref[...].astype(jnp.float32) * g).astype(o_ref.dtype)

    return kernel


def _pick_tiles(NC, S, itemsize):
    """Lane-dense spatial tile + channel-row tile, targeting ~<=2 MiB per block."""
    q = {4: 8, 2: 16, 1: 32}.get(itemsize, 8)        # sublane quantum per dtype
    # Spatial (lane) tile: large multiple of 128 (or the full extent when small / odd).
    if S % 128 == 0:
        ts = min(S, 2048)
    elif S <= 2048:
        ts = S
    else:
        ts = 2048
    # Channel-row tile: divisor of NC, multiple of q, block <= ~2 MiB.
    target_rows = max(q, min(NC, (2 * 1024 * 1024) // max(1, ts * itemsize)))
    if NC <= target_rows or NC % q != 0:
        rt = NC
    else:
        rt = q
        r = q
        while r <= target_rows:
            if NC % r == 0:
                rt = r
            r += q
    return rt, ts


def _vmem_limit(bytes_needed):
    # Generous headroom, clamped so it also fits v7x's 64 MiB physical VMEM.
    return int(min(max(2 * bytes_needed + (4 << 20), 32 << 20), 48 << 20))


@jax.jit
def channel_attention_pallas(x, w1, w2):
    """ChannelAttention forward.

    x : (N, C, D, H, W), any float dtype (streamed in native dtype)
    w1: (C // r, C)  first Linear weight  (PyTorch layout, bias=False)
    w2: (C, C // r)  second Linear weight (PyTorch layout, bias=False)
    """
    N, C, D, H, W = x.shape
    Cr = w1.shape[0]
    S = D * H * W
    NC = N * C
    NCr = N * Cr
    itemsize = jnp.dtype(x.dtype).itemsize

    rt, ts = _pick_tiles(NC, S, itemsize)
    n_rt = NC // rt
    n_st = pl.cdiv(S, ts)

    x2 = x.reshape(NC, S)                       # free (contiguous) view, native dtype

    # Block-diagonal expansion of the per-sample FC so the gate stays in the flat
    # (N*C,) sublane layout inside the kernel (no relayout / transpose needed).
    eye_n = jnp.eye(N, dtype=jnp.float32)
    w1b = jnp.kron(eye_n, w1.astype(jnp.float32))       # (N*Cr, N*C)
    w2b = jnp.kron(eye_n, w2.astype(jnp.float32))       # (N*C, N*Cr)

    # ---- Pass 1: per-tile partial spatial sums (fully parallel 2-D grid) ----
    vmem1 = _vmem_limit(2 * rt * ts * itemsize + 2 * rt * 4)
    partials = pl.pallas_call(
        _make_pool_kernel(S, ts, S % ts != 0),
        out_shape=jax.ShapeDtypeStruct((n_st, NC, 1), jnp.float32),
        grid_spec=pltpu.PrefetchScalarGridSpec(
            num_scalar_prefetch=0,
            grid=(n_rt, n_st),
            in_specs=[pl.BlockSpec((rt, ts), lambda i, j: (i, j))],
            out_specs=pl.BlockSpec((1, rt, 1), lambda i, j: (j, i, 0))),
        compiler_params=pltpu.CompilerParams(
            dimension_semantics=("parallel", "parallel"),
            vmem_limit_bytes=vmem1),
    )(x2)

    # ---- Pass 2: out = x * sigmoid(FC(mean)), finalize + FC fused in-kernel ----
    small = 2 * (n_st * NC * 4 + NCr * NC * 4 + rt * NCr * 4)
    vmem2 = _vmem_limit(4 * rt * ts * itemsize + small)
    out2 = pl.pallas_call(
        _make_scale_kernel(S),
        out_shape=jax.ShapeDtypeStruct((NC, S), x.dtype),
        grid_spec=pltpu.PrefetchScalarGridSpec(
            num_scalar_prefetch=0,
            grid=(n_rt, n_st),
            in_specs=[pl.BlockSpec((n_st, NC, 1), lambda i, j: (0, 0, 0)),
                      pl.BlockSpec((NCr, NC), lambda i, j: (0, 0)),
                      pl.BlockSpec((rt, NCr), lambda i, j: (i, 0)),
                      pl.BlockSpec((rt, ts), lambda i, j: (i, j))],
            out_specs=pl.BlockSpec((rt, ts), lambda i, j: (i, j))),
        compiler_params=pltpu.CompilerParams(
            dimension_semantics=("parallel", "parallel"),
            vmem_limit_bytes=vmem2),
    )(partials, w1b, w2b, x2)

    # NOTE: when N*C*S*itemsize fits VMEM (~<=24 MiB on v7x, ~<=48 MiB on v5e/v6e) a single
    # VMEM-resident kernel would additionally remove the second HBM read of x.
    return out2.reshape(N, C, D, H, W)


def channel_attention_ref(x, w1, w2):
    """Pure-JAX reference matching the PyTorch forward."""
    y = x.astype(jnp.float32).mean(axis=(2, 3, 4))           # (N, C)
    h = jnp.maximum(y @ w1.T.astype(jnp.float32), 0.0)       # (N, C//r)
    g = jax.nn.sigmoid(h @ w2.T.astype(jnp.float32))         # (N, C)
    return (x.astype(jnp.float32) * g[:, :, None, None, None]).astype(x.dtype)


if __name__ == "__main__":
    key = jax.random.PRNGKey(0)
    k_x, k_w1, k_w2 = jax.random.split(key, 3)

    N, C, reduction = 2, 32, 16
    D = H = W = 16
    Cr = C // reduction

    x = jax.random.normal(k_x, (N, C, D, H, W), dtype=jnp.float32)
    # Deterministic synthetic parameters (shapes per nn.Linear with bias=False).
    w1 = jax.random.normal(k_w1, (Cr, C), dtype=jnp.float32) * 0.1
    w2 = jax.random.normal(k_w2, (C, Cr), dtype=jnp.float32) * 0.1

    out = channel_attention_pallas(x, w1, w2)
    out = jax.block_until_ready(out)

    ref = channel_attention_ref(x, w1, w2)
    assert out.shape == (N, C, D, H, W)
    err = float(jnp.max(jnp.abs(out - ref)))
    assert jnp.allclose(out, ref, atol=1e-4, rtol=1e-4), err

    print("KERNEL_OK")
</pallas_src>

<mosaic_0001>
module attributes {stable_mosaic.version = 11 : i64} {
  func.func @kernel(%arg0: i32, %arg1: i32, %arg2: memref<64x2048xf32, #tpu.memory_space<vmem>>, %arg3: memref<1x64x1xf32, #tpu.memory_space<vmem>>) attributes {dimension_semantics = [#tpu.dimension_semantics<parallel>, #tpu.dimension_semantics<parallel>], iteration_bounds = array<i64: 1, 2>, scalar_prefetch = 0 : i64, scratch_operands = 0 : i64, tpu.core_type = #tpu.core_type<tc>, window_params = [{transform_indices = @transform_0, window_bounds = array<i64: 64, 2048>}, {transform_indices = @transform_1, window_bounds = array<i64: 1, 64, 1>}]} {
    %c0 = arith.constant 0 : index
    %c0_0 = arith.constant 0 : index
    %0 = vector.load %arg2[%c0, %c0_0] : memref<64x2048xf32, #tpu.memory_space<vmem>>, vector<64x2048xf32>
    %cst = arith.constant dense<0.000000e+00> : vector<64xf32>
    %1 = vector.multi_reduction <add>, %0, %cst [1] : vector<64x2048xf32> to vector<64xf32>
    %2 = vector.shape_cast %1 : vector<64xf32> to vector<64x1xf32>
    %c0_1 = arith.constant 0 : index
    %c0_2 = arith.constant 0 : index
    %c0_3 = arith.constant 0 : index
    %3 = vector.load %arg3[%c0_1, %c0_2, %c0_3] : memref<1x64x1xf32, #tpu.memory_space<vmem>>, vector<1x64x1xf32>
    %4 = vector.shape_cast %3 : vector<1x64x1xf32> to vector<64x1xf32>
    %5 = vector.shape_cast %2 : vector<64x1xf32> to vector<1x64x1xf32>
    tpu.vector_store %arg3[%c0_1, %c0_2, %c0_3], %5 {strides = array<i32>} : memref<1x64x1xf32, #tpu.memory_space<vmem>>, vector<1x64x1xf32>,
    return
  }
  func.func @transform_0(%arg0: i32, %arg1: i32) -> (i32, i32) {
    %c0_i32 = arith.constant 0 : i32
    return %arg0, %arg1 : i32, i32
  }
  func.func @transform_1(%arg0: i32, %arg1: i32) -> (i32, i32, i32) {
    %c0_i32 = arith.constant 0 : i32
    %c0_i32_0 = arith.constant 0 : i32
    return %arg1, %arg0, %c0_i32 : i32, i32, i32
  }
}

module attributes {stable_mosaic.version = 11 : i64} {
  func.func @kernel(%arg0: i32, %arg1: i32, %arg2: memref<2x64x1xf32, #tpu.memory_space<vmem>>, %arg3: memref<4x64xf32, #tpu.memory_space<vmem>>, %arg4: memref<64x4xf32, #tpu.memory_space<vmem>>, %arg5: memref<64x2048xf32, #tpu.memory_space<vmem>>, %arg6: memref<64x2048xf32, #tpu.memory_space<vmem>>) attributes {dimension_semantics = [#tpu.dimension_semantics<parallel>, #tpu.dimension_semantics<parallel>], iteration_bounds = array<i64: 1, 2>, scalar_prefetch = 0 : i64, scratch_operands = 0 : i64, tpu.core_type = #tpu.core_type<tc>, window_params = [{pipeline_mode = #tpu.pipeline_mode<synchronous>, transform_indices = @transform_0, window_bounds = array<i64: 2, 64, 1>}, {pipeline_mode = #tpu.pipeline_mode<synchronous>, transform_indices = @transform_1, window_bounds = array<i64: 4, 64>}, {transform_indices = @transform_2, window_bounds = array<i64: 64, 4>}, {transform_indices = @transform_3, window_bounds = array<i64: 64, 2048>}, {transform_indices = @transform_4, window_bounds = array<i64: 64, 2048>}]} {
    %c0 = arith.constant 0 : index
    %c0_0 = arith.constant 0 : index
    %c0_1 = arith.constant 0 : index
    %0 = vector.load %arg2[%c0, %c0_0, %c0_1] : memref<2x64x1xf32, #tpu.memory_space<vmem>>, vector<2x64x1xf32>
    %cst = arith.constant dense<0.000000e+00> : vector<64x1xf32>
    %1 = vector.multi_reduction <add>, %0, %cst [0] : vector<2x64x1xf32> to vector<64x1xf32>
    %cst_2 = arith.constant 2.44140625E-4 : f32
    %2 = vector.broadcast %cst_2 : f32 to vector<64x1xf32>
    %3 = arith.mulf %1, %2 : vector<64x1xf32>
    %c0_3 = arith.constant 0 : index
    %c0_4 = arith.constant 0 : index
    %4 = vector.load %arg3[%c0_3, %c0_4] : memref<4x64xf32, #tpu.memory_space<vmem>>, vector<4x64xf32>
    %cst_5 = arith.constant dense<0.000000e+00> : vector<4x1xf32>
    %5 = tpu.matmul %4, %3, %cst_5 {dimension_numbers = #tpu.dot_dimension_numbers<[1], [0], [0], [1], [0, 0, 1, 1], [], []>} : vector<4x64xf32>, vector<64x1xf32>, vector<4x1xf32> -> vector<4x1xf32>
    %cst_6 = arith.constant 0.000000e+00 : f32
    %6 = vector.broadcast %cst_6 : f32 to vector<4x1xf32>
    %7 = arith.maximumf %5, %6 : vector<4x1xf32>
    %c0_7 = arith.constant 0 : index
    %c0_8 = arith.constant 0 : index
    %8 = vector.load %arg4[%c0_7, %c0_8] : memref<64x4xf32, #tpu.memory_space<vmem>>, vector<64x4xf32>
    %cst_9 = arith.constant dense<0.000000e+00> : vector<64x1xf32>
    %9 = tpu.matmul %8, %7, %cst_9 {dimension_numbers = #tpu.dot_dimension_numbers<[1], [0], [0], [1], [0, 0, 1, 1], [], []>} : vector<64x4xf32>, vector<4x1xf32>, vector<64x1xf32> -> vector<64x1xf32>
    %10 = arith.negf %9 : vector<64x1xf32>
    %11 = math.exp %10 : vector<64x1xf32>
    %cst_10 = arith.constant 1.000000e+00 : f32
    %12 = vector.broadcast %cst_10 : f32 to vector<64x1xf32>
    %13 = arith.addf %12, %11 : vector<64x1xf32>
    %14 = arith.divf %12, %13 : vector<64x1xf32>
    %c0_11 = arith.constant 0 : index
    %c0_12 = arith.constant 0 : index
    %15 = vector.load %arg5[%c0_11, %c0_12] : memref<64x2048xf32, #tpu.memory_space<vmem>>, vector<64x2048xf32>
    %16 = vector.broadcast %14 : vector<64x1xf32> to vector<64x2048xf32>
    %17 = arith.mulf %15, %16 : vector<64x2048xf32>
    %c0_13 = arith.constant 0 : index
    %c0_14 = arith.constant 0 : index
    %18 = vector.load %arg6[%c0_13, %c0_14] : memref<64x2048xf32, #tpu.memory_space<vmem>>, vector<64x2048xf32>
    tpu.vector_store %arg6[%c0_13, %c0_14], %17 {strides = array<i32>} : memref<64x2048xf32, #tpu.memory_space<vmem>>, vector<64x2048xf32>,
    return
  }
  func.func @transform_0(%arg0: i32, %arg1: i32) -> (i32, i32, i32) {
    %c0_i32 = arith.constant 0 : i32
    %c0_i32_0 = arith.constant 0 : i32
    %c0_i32_1 = arith.constant 0 : i32
    %c0_i32_2 = arith.constant 0 : i32
    return %c0_i32, %c0_i32_0, %c0_i32_1 : i32, i32, i32
  }
  func.func @transform_1(%arg0: i32, %arg1: i32) -> (i32, i32) {
    %c0_i32 = arith.constant 0 : i32
    %c0_i32_0 = arith.constant 0 : i32
    %c0_i32_1 = arith.constant 0 : i32
    return %c0_i32, %c0_i32_0 : i32, i32
  }
  func.func @transform_2(%arg0: i32, %arg1: i32) -> (i32, i32) {
    %c0_i32 = arith.constant 0 : i32
    %c0_i32_0 = arith.constant 0 : i32
    return %arg0, %c0_i32 : i32, i32
  }
  func.func @transform_3(%arg0: i32, %arg1: i32) -> (i32, i32) {
    %c0_i32 = arith.constant 0 : i32
    return %arg0, %arg1 : i32, i32
  }
  func.func @transform_4(%arg0: i32, %arg1: i32) -> (i32, i32) {
    %c0_i32 = arith.constant 0 : i32
    return %arg0, %arg1 : i32, i32
  }
}

</mosaic_0001>

<llo_original>
// kernel: channel_attention_pallas.2
$region0: #{channel_attention_pallas.2}
  #allocation0 [shape = 'u32[]', space=smem, size = 0x4, offset = 0x4, fixed_abs, tag = 'smem constant byte address 0x4 - core index']
  #allocation1 [shape = 'u32[144,128]{1,0:T(1,128)}', space=vmem, size = 0x12000, scoped, tag = 'internal scratch']
  %s0 = inlined_call_operand.vmem [shape: f32[64,4096], index: 0, kind: input, shape index: {}]
  %s1 = inlined_call_operand.vmem [shape: f32[2,64,1], index: 1, kind: output, shape index: {}]
  %s2 = sld [smem:[#allocation0]]
  $region60: #{channel_attention_pallas.2} parent=0
    _
  %s4 = ssub.s32 1, %s2
  %s5 = scalar_select 0, %s4, %s2
  $region1: #{channel_attention_pallas.2} parent=0
    #allocation2 [shape = 'u8[1048576]{0}', space=vmem, size = 0x100000, scoped, tag = 'input window, operand 0']
    loop: start=0, step=1, limit=4
    $region2: #{channel_attention_pallas.2} parent=1 // loop_pre_header
      _
    $region3: #{channel_attention_pallas.2} parent=1 // loop_header
      %s7 = sphi 0, %s11
      %p8 = scmp.ge.s32.totalorder %s7, 4
      %s14 = sphi 0, %s26
      %s15 = sphi 0, %s22
      %s16 = sphi 0, %s14
      %s17 = sphi 0, %s15
      %s18 = sphi 0, %s16
      %s19 = sphi 0, %s17
      %s31 = sphi 0, %s33
      %s34 = sphi 0, %s31
      %s35 = sphi 0, %s34
      %s51 = sphi 0, %s35
      %s59 = sphi 0, %s61
      %s62 = sphi 0, %s59
      %s63 = sphi 0, %s62
      %s79 = sphi 0, %s63
    $region4: #{channel_attention_pallas.2} parent=1 // loop_header_branch
      %10 = sbr.rel (%p8) target = $region8
    $region5: #{channel_attention_pallas.2} parent=1 // loop_body
      %s12 = ssub.s32 %s7, 1
      %s13 = ssub.s32 %s7, 2
      %s20 = sadd.s32 1, %s15
      %p21 = scmp.ge.s32.totalorder %s20, 2
      %s22 = scalar_select %p21, 0, %s20
      %s23 = sadd.s32 1, %s14
      %s24 = scalar_select %p21, %s23, %s14
      %p25 = scmp.ge.s32.totalorder %s24, 1
      %s26 = scalar_select %p25, 0, %s24
      %s27 = ssub.s32 %s14, %s26
      %s28 = ssub.s32 %s15, %s22
      %s29 = sor.u32 %s27, %s28
      %p30 = scmp.eq.s32.totalorder %s29, 0
      %s32 = sadd.s32 %s31, 1
      %s33 = scalar_select %p30, %s31, %s32
      %p36 = pneg %p30
      %p37 = scmp.eq.s32.totalorder %s7, 1
      %p38 = por %p36, %p37
      %p39 = scmp.ne.s32.totalorder %s31, %s34
      %p40 = scmp.eq.s32.totalorder %s7, 0
      %p41 = por %p39, %p40
      %p42 = scmp.ne.s32.totalorder %s31, %s34
      %p43 = scmp.eq.s32.totalorder %s12, 1
      %p44 = por %p42, %p43
      %p45 = scmp.ne.s32.totalorder %s34, %s35
      %p46 = scmp.eq.s32.totalorder %s12, 0
      %p47 = por %p45, %p46
      %p48 = scmp.ne.s32.totalorder %s34, %s35
      %p49 = scmp.eq.s32.totalorder %s13, 1
      %p50 = por %p48, %p49
      %p52 = scmp.ne.s32.totalorder %s35, %s51
      %p53 = scmp.eq.s32.totalorder %s13, 0
      %p54 = por %p52, %p53
      %s55 = ssub.s32 %s15, %s22
      %s56 = ssub.s32 %s14, %s26
      %s57 = sor.u32 %s55, %s56
      %p58 = scmp.eq.s32.totalorder %s57, 0
      %s60 = sadd.s32 %s59, 1
      %s61 = scalar_select %p58, %s59, %s60
      %p64 = pneg %p58
      %p65 = scmp.eq.s32.totalorder %s7, 1
      %p66 = por %p64, %p65
      %p67 = scmp.ne.s32.totalorder %s59, %s62
      %p68 = scmp.eq.s32.totalorder %s7, 0
      %p69 = por %p67, %p68
      %p70 = scmp.ne.s32.totalorder %s59, %s62
      %p71 = scmp.eq.s32.totalorder %s12, 1
      %p72 = por %p70, %p71
      %p73 = scmp.ne.s32.totalorder %s62, %s63
      %p74 = scmp.eq.s32.totalorder %s12, 0
      %p75 = por %p73, %p74
      %p76 = scmp.ne.s32.totalorder %s62, %s63
      %p77 = scmp.eq.s32.totalorder %s13, 1
      %p78 = por %p76, %p77
      %p80 = scmp.ne.s32.totalorder %s63, %s79
      %p81 = scmp.eq.s32.totalorder %s13, 0
      %p82 = por %p80, %p81
      %p83 = scmp.le.s32.totalorder 1, %s7
      %p84 = scmp.lt.s32.totalorder %s7, 3
      %p85 = pnand %p83, %p84
      %p86 = pneg %p85
      // Predicated region
      $region9: #{channel_attention_pallas.2} parent=5 // pred_check
        _
      $region10: #{channel_attention_pallas.2} parent=5 // pred_check_branch
        %88 = sbr.rel (%p85) target = $region12
      $region11: #{channel_attention_pallas.2} parent=5 // pred_region
        %s89 = ssub.s32 %s7, 1
      $region12: #{channel_attention_pallas.2} parent=5 // pred_fallthru
        _
      %p90 = scmp.lt.s32.totalorder %s7, 2
      // Predicated region
      $region13: #{channel_attention_pallas.2} parent=5 // pred_check
        %p91 = pneg %p90
      $region14: #{channel_attention_pallas.2} parent=5 // pred_check_branch
        %93 = sbr.rel (%p91) target = $region16
      $region15: #{channel_attention_pallas.2} parent=5 // pred_region
        // Predicated region
        $region17: #{channel_attention_pallas.2} parent=15 // pred_check
          %p94 = pneg %p41
        $region18: #{channel_attention_pallas.2} parent=15 // pred_check_branch
          %96 = sbr.rel (%p94) target = $region20
        $region19: #{channel_attention_pallas.2} parent=15 // pred_region
          %s97 = sand.u32 %s31, 1
          %s98 = sand.u32 %s31, 1
          %s99 = smul.addr %s98, 1024
          %s100 = scalar_lea.vmem [#allocation2], %s99
          %s101 = smul.u32 8, %s14
          %s102 = smul.u32 16, %s15
          %s103 = smul.addr %s101, 32
          %s104 = sadd.s32 %s102, %s103
          %s105 = smul.addr %s104, 8
          %s106 = scalar_lea.vmem %s0, %s105
          // Predicated region
          $region21: #{channel_attention_pallas.2} parent=19 // pred_check
            _
          $region22: #{channel_attention_pallas.2} parent=19 // pred_check_branch
            %108 = sbr.rel (0) target = $region24
          $region23: #{channel_attention_pallas.2} parent=19 // pred_region
            // Predicated region
            $region25: #{channel_attention_pallas.2} parent=23 // pred_check
              _
            $region26: #{channel_attention_pallas.2} parent=23 // pred_check_branch
              %110 = sbr.rel (0) target = $region28
            $region27: #{channel_attention_pallas.2} parent=23 // pred_region
              loop: start=0, step=1, limit=1
              $region29: #{channel_attention_pallas.2} parent=27 // loop_pre_header
                _
              $region30: #{channel_attention_pallas.2} parent=27 // loop_header
                %s112 = sphi 0, %s116
                %p113 = scmp.ge.s32.totalorder %s112, 1
                %s117 = sphi %s106, %s106
                %s118 = sphi %s100, %s100
              $region31: #{channel_attention_pallas.2} parent=27 // loop_header_branch
                %115 = sbr.rel (%p113) target = $region35
              $region32: #{channel_attention_pallas.2} parent=27 // loop_body
                %v119 = vld [vmem:[%s117] sm:$0xff]
                %120 = vst [vmem:[%s118] sm:$0xff] %v119
                %v121 = vld [vmem:[%s117 + $0x8] sm:$0xff]
                %122 = vst [vmem:[%s118 + $0x8] sm:$0xff] %v121
                %v123 = vld [vmem:[%s117 + $0x10] sm:$0xff]
                %124 = vst [vmem:[%s118 + $0x10] sm:$0xff] %v123
                %v125 = vld [vmem:[%s117 + $0x18] sm:$0xff]
                %126 = vst [vmem:[%s118 + $0x18] sm:$0xff] %v125
                %v127 = vld [vmem:[%s117 + $0x20] sm:$0xff]
                %128 = vst [vmem:[%s118 + $0x20] sm:$0xff] %v127
                %v129 = vld [vmem:[%s117 + $0x28] sm:$0xff]
                %130 = vst [vmem:[%s118 + $0x28] sm:$0xff] %v129
                %v131 = vld [vmem:[%s117 + $0x30] sm:$0xff]
                %132 = vst [vmem:[%s118 + $0x30] sm:$0xff] %v131
                %v133 = vld [vmem:[%s117 + $0x38] sm:$0xff]
                %134 = vst [vmem:[%s118 + $0x38] sm:$0xff] %v133
                %v135 = vld [vmem:[%s117 + $0x40] sm:$0xff]
                %136 = vst [vmem:[%s118 + $0x40] sm:$0xff] %v135
                %v137 = vld [vmem:[%s117 + $0x48] sm:$0xff]
                %138 = vst [vmem:[%s118 + $0x48] sm:$0xff] %v137
                %v139 = vld [vmem:[%s117 + $0x50] sm:$0xff]
                %140 = vst [vmem:[%s118 + $0x50] sm:$0xff] %v139
                %v141 = vld [vmem:[%s117 + $0x58] sm:$0xff]
                %142 = vst [vmem:[%s118 + $0x58] sm:$0xff] %v141
                %v143 = vld [vmem:[%s117 + $0x60] sm:$0xff]
                %144 = vst [vmem:[%s118 + $0x60] sm:$0xff] %v143
                %v145 = vld [vmem:[%s117 + $0x68] sm:$0xff]
                %146 = vst [vmem:[%s118 + $0x68] sm:$0xff] %v145
                %v147 = vld [vmem:[%s117 + $0x70] sm:$0xff]
                %148 = vst [vmem:[%s118 + $0x70] sm:$0xff] %v147
                %v149 = vld [vmem:[%s117 + $0x78] sm:$0xff]
                %150 = vst [vmem:[%s118 + $0x78] sm:$0xff] %v149
                %v151 = vld [vmem:[%s117 + $0x100] sm:$0xff]
                %152 = vst [vmem:[%s118 + $0x80] sm:$0xff] %v151
                %v153 = vld [vmem:[%s117 + $0x108] sm:$0xff]
                %154 = vst [vmem:[%s118 + $0x88] sm:$0xff] %v153
                %v155 = vld [vmem:[%s117 + $0x110] sm:$0xff]
                %156 = vst [vmem:[%s118 + $0x90] sm:$0xff] %v155
                %v157 = vld [vmem:[%s117 + $0x118] sm:$0xff]
                %158 = vst [vmem:[%s118 + $0x98] sm:$0xff] %v157
                %v159 = vld [vmem:[%s117 + $0x120] sm:$0xff]
                %160 = vst [vmem:[%s118 + $0xa0] sm:$0xff] %v159
                %v161 = vld [vmem:[%s117 + $0x128] sm:$0xff]
                %162 = vst [vmem:[%s118 + $0xa8] sm:$0xff] %v161
                %v163 = vld [vmem:[%s117 + $0x130] sm:$0xff]
                %164 = vst [vmem:[%s118 + $0xb0] sm:$0xff] %v163
                %v165 = vld [vmem:[%s117 + $0x138] sm:$0xff]
                %166 = vst [vmem:[%s118 + $0xb8] sm:$0xff] %v165
                %v167 = vld [vmem:[%s117 + $0x140] sm:$0xff]
                %168 = vst [vmem:[%s118 + $0xc0] sm:$0xff] %v167
                %v169 = vld [vmem:[%s117 + $0x148] sm:$0xff]
                %170 = vst [vmem:[%s118 + $0xc8] sm:$0xff] %v169
                %v171 = vld [vmem:[%s117 + $0x150] sm:$0xff]
                %172 = vst [vmem:[%s118 + $0xd0] sm:$0xff] %v171
                %v173 = vld [vmem:[%s117 + $0x158] sm:$0xff]
                %174 = vst [vmem:[%s118 + $0xd8] sm:$0xff] %v173
                %v175 = vld [vmem:[%s117 + $0x160] sm:$0xff]
                %176 = vst [vmem:[%s118 + $0xe0] sm:$0xff] %v175
                %v177 = vld [vmem:[%s117 + $0x168] sm:$0xff]
                %178 = vst [vmem:[%s118 + $0xe8] sm:$0xff] %v177
                %v179 = vld [vmem:[%s117 + $0x170] sm:$0xff]
                %180 = vst [vmem:[%s118 + $0xf0] sm:$0xff] %v179
                %v181 = vld [vmem:[%s117 + $0x178] sm:$0xff]
                %182 = vst [vmem:[%s118 + $0xf8] sm:$0xff] %v181
                %v183 = vld [vmem:[%s117 + $0x200] sm:$0xff]
                %184 = vst [vmem:[%s118 + $0x100] sm:$0xff] %v183
                %v185 = vld [vmem:[%s117 + $0x208] sm:$0xff]
                %186 = vst [vmem:[%s118 + $0x108] sm:$0xff] %v185
                %v187 = vld [vmem:[%s117 + $0x210] sm:$0xff]
                %188 = vst [vmem:[%s118 + $0x110] sm:$0xff] %v187
                %v189 = vld [vmem:[%s117 + $0x218] sm:$0xff]
                %190 = vst [vmem:[%s118 + $0x118] sm:$0xff] %v189
                %v191 = vld [vmem:[%s117 + $0x220] sm:$0xff]
                %192 = vst [vmem:[%s118 + $0x120] sm:$0xff] %v191
                %v193 = vld [vmem:[%s117 + $0x228] sm:$0xff]
                %194 = vst [vmem:[%s118 + $0x128] sm:$0xff] %v193
                %v195 = vld [vmem:[%s117 + $0x230] sm:$0xff]
                %196 = vst [vmem:[%s118 + $0x130] sm:$0xff] %v195
                %v197 = vld [vmem:[%s117 + $0x238] sm:$0xff]
                %198 = vst [vmem:[%s118 + $0x138] sm:$0xff] %v197
                %v199 = vld [vmem:[%s117 + $0x240] sm:$0xff]
                %200 = vst [vmem:[%s118 + $0x140] sm:$0xff] %v199
                %v201 = vld [vmem:[%s117 + $0x248] sm:$0xff]
                %202 = vst [vmem:[%s118 + $0x148] sm:$0xff] %v201
                %v203 = vld [vmem:[%s117 + $0x250] sm:$0xff]
                %204 = vst [vmem:[%s118 + $0x150] sm:$0xff] %v203
                %v205 = vld [vmem:[%s117 + $0x258] sm:$0xff]
                %206 = vst [vmem:[%s118 + $0x158] sm:$0xff] %v205
                %v207 = vld [vmem:[%s117 + $0x260] sm:$0xff]
                %208 = vst [vmem:[%s118 + $0x160] sm:$0xff] %v207
                %v209 = vld [vmem:[%s117 + $0x268] sm:$0xff]
                %210 = vst [vmem:[%s118 + $0x168] sm:$0xff] %v209
                %v211 = vld [vmem:[%s117 + $0x270] sm:$0xff]
                %212 = vst [vmem:[%s118 + $0x170] sm:$0xff] %v211
                %v213 = vld [vmem:[%s117 + $0x278] sm:$0xff]
                %214 = vst [vmem:[%s118 + $0x178] sm:$0xff] %v213
                %v215 = vld [vmem:[%s117 + $0x300] sm:$0xff]
                %216 = vst [vmem:[%s118 + $0x180] sm:$0xff] %v215
                %v217 = vld [vmem:[%s117 + $0x308] sm:$0xff]
                %218 = vst [vmem:[%s118 + $0x188] sm:$0xff] %v217
                %v219 = vld [vmem:[%s117 + $0x310] sm:$0xff]
                %220 = vst [vmem:[%s118 + $0x190] sm:$0xff] %v219
                %v221 = vld [vmem:[%s117 + $0x318] sm:$0xff]
                %222 = vst [vmem:[%s118 + $0x198] sm:$0xff] %v221
                %v223 = vld [vmem:[%s117 + $0x320] sm:$0xff]
                %224 = vst [vmem:[%s118 + $0x1a0] sm:$0xff] %v223
                %v225 = vld [vmem:[%s117 + $0x328] sm:$0xff]
                %226 = vst [vmem:[%s118 + $0x1a8] sm:$0xff] %v225
                %v227 = vld [vmem:[%s117 + $0x330] sm:$0xff]
                %228 = vst [vmem:[%s118 + $0x1b0] sm:$0xff] %v227
                %v229 = vld [vmem:[%s117 + $0x338] sm:$0xff]
                %230 = vst [vmem:[%s118 + $0x1b8] sm:$0xff] %v229
                %v231 = vld [vmem:[%s117 + $0x340] sm:$0xff]
                %232 = vst [vmem:[%s118 + $0x1c0] sm:$0xff] %v231
                %v233 = vld [vmem:[%s117 + $0x348] sm:$0xff]
                %234 = vst [vmem:[%s118 + $0x1c8] sm:$0xff] %v233
                %v235 = vld [vmem:[%s117 + $0x350] sm:$0xff]
                %236 = vst [vmem:[%s118 + $0x1d0] sm:$0xff] %v235
                %v237 = vld [vmem:[%s117 + $0x358] sm:$0xff]
                %238 = vst [vmem:[%s118 + $0x1d8] sm:$0xff] %v237
                %v239 = vld [vmem:[%s117 + $0x360] sm:$0xff]
                %240 = vst [vmem:[%s118 + $0x1e0] sm:$0xff] %v239
                %v241 = vld [vmem:[%s117 + $0x368] sm:$0xff]
                %242 = vst [vmem:[%s118 + $0x1e8] sm:$0xff] %v241
                %v243 = vld [vmem:[%s117 + $0x370] sm:$0xff]
                %244 = vst [vmem:[%s118 + $0x1f0] sm:$0xff] %v243
                %v245 = vld [vmem:[%s117 + $0x378] sm:$0xff]
                %246 = vst [vmem:[%s118 + $0x1f8] sm:$0xff] %v245
                %v247 = vld [vmem:[%s117 + $0x400] sm:$0xff]
                %248 = vst [vmem:[%s118 + $0x200] sm:$0xff] %v247
                %v249 = vld [vmem:[%s117 + $0x408] sm:$0xff]
                %250 = vst [vmem:[%s118 + $0x208] sm:$0xff] %v249
                %v251 = vld [vmem:[%s117 + $0x410] sm:$0xff]
                %252 = vst [vmem:[%s118 + $0x210] sm:$0xff] %v251
                %v253 = vld [vmem:[%s117 + $0x418] sm:$0xff]
                %254 = vst [vmem:[%s118 + $0x218] sm:$0xff] %v253
                %v255 = vld [vmem:[%s117 + $0x420] sm:$0xff]
                %256 = vst [vmem:[%s118 + $0x220] sm:$0xff] %v255
                %v257 = vld [vmem:[%s117 + $0x428] sm:$0xff]
                %258 = vst [vmem:[%s118 + $0x228] sm:$0xff] %v257
                %v259 = vld [vmem:[%s117 + $0x430] sm:$0xff]
                %260 = vst [vmem:[%s118 + $0x230] sm:$0xff] %v259
                %v261 = vld [vmem:[%s117 + $0x438] sm:$0xff]
                %262 = vst [vmem:[%s118 + $0x238] sm:$0xff] %v261
                %v263 = vld [vmem:[%s117 + $0x440] sm:$0xff]
                %264 = vst [vmem:[%s118 + $0x240] sm:$0xff] %v263
                %v265 = vld [vmem:[%s117 + $0x448] sm:$0xff]
                %266 = vst [vmem:[%s118 + $0x248] sm:$0xff] %v265
                %v267 = vld [vmem:[%s117 + $0x450] sm:$0xff]
                %268 = vst [vmem:[%s118 + $0x250] sm:$0xff] %v267
                %v269 = vld [vmem:[%s117 + $0x458] sm:$0xff]
                %270 = vst [vmem:[%s118 + $0x258] sm:$0xff] %v269
                %v271 = vld [vmem:[%s117 + $0x460] sm:$0xff]
                %272 = vst [vmem:[%s118 + $0x260] sm:$0xff] %v271
                %v273 = vld [vmem:[%s117 + $0x468] sm:$0xff]
                %274 = vst [vmem:[%s118 + $0x268] sm:$0xff] %v273
                %v275 = vld [vmem:[%s117 + $0x470] sm:$0xff]
                %276 = vst [vmem:[%s118 + $0x270] sm:$0xff] %v275
                %v277 = vld [vmem:[%s117 + $0x478] sm:$0xff]
                %278 = vst [vmem:[%s118 + $0x278] sm:$0xff] %v277
                %v279 = vld [vmem:[%s117 + $0x500] sm:$0xff]
                %280 = vst [vmem:[%s118 + $0x280] sm:$0xff] %v279
                %v281 = vld [vmem:[%s117 + $0x508] sm:$0xff]
                %282 = vst [vmem:[%s118 + $0x288] sm:$0xff] %v281
                %v283 = vld [vmem:[%s117 + $0x510] sm:$0xff]
                %284 = vst [vmem:[%s118 + $0x290] sm:$0xff] %v283
                %v285 = vld [vmem:[%s117 + $0x518] sm:$0xff]
                %286 = vst [vmem:[%s118 + $0x298] sm:$0xff] %v285
                %v287 = vld [vmem:[%s117 + $0x520] sm:$0xff]
                %288 = vst [vmem:[%s118 + $0x2a0] sm:$0xff] %v287
                %v289 = vld [vmem:[%s117 + $0x528] sm:$0xff]
                %290 = vst [vmem:[%s118 + $0x2a8] sm:$0xff] %v289
                %v291 = vld [vmem:[%s117 + $0x530] sm:$0xff]
                %292 = vst [vmem:[%s118 + $0x2b0] sm:$0xff] %v291
                %v293 = vld [vmem:[%s117 + $0x538] sm:$0xff]
                %294 = vst [vmem:[%s118 + $0x2b8] sm:$0xff] %v293
                %v295 = vld [vmem:[%s117 + $0x540] sm:$0xff]
                %296 = vst [vmem:[%s118 + $0x2c0] sm:$0xff] %v295
                %v297 = vld [vmem:[%s117 + $0x548] sm:$0xff]
                %298 = vst [vmem:[%s118 + $0x2c8] sm:$0xff] %v297
                %v299 = vld [vmem:[%s117 + $0x550] sm:$0xff]
                %300 = vst [vmem:[%s118 + $0x2d0] sm:$0xff] %v299
                %v301 = vld [vmem:[%s117 + $0x558] sm:$0xff]
                %302 = vst [vmem:[%s118 + $0x2d8] sm:$0xff] %v301
                %v303 = vld [vmem:[%s117 + $0x560] sm:$0xff]
                %304 = vst [vmem:[%s118 + $0x2e0] sm:$0xff] %v303
                %v305 = vld [vmem:[%s117 + $0x568] sm:$0xff]
                %306 = vst [vmem:[%s118 + $0x2e8] sm:$0xff] %v305
                %v307 = vld [vmem:[%s117 + $0x570] sm:$0xff]
                %308 = vst [vmem:[%s118 + $0x2f0] sm:$0xff] %v307
                %v309 = vld [vmem:[%s117 + $0x578] sm:$0xff]
                %310 = vst [vmem:[%s118 + $0x2f8] sm:$0xff] %v309
                %v311 = vld [vmem:[%s117 + $0x600] sm:$0xff]
                %312 = vst [vmem:[%s118 + $0x300] sm:$0xff] %v311
                %v313 = vld [vmem:[%s117 + $0x608] sm:$0xff]
                %314 = vst [vmem:[%s118 + $0x308] sm:$0xff] %v313
                %v315 = vld [vmem:[%s117 + $0x610] sm:$0xff]
                %316 = vst [vmem:[%s118 + $0x310] sm:$0xff] %v315
                %v317 = vld [vmem:[%s117 + $0x618] sm:$0xff]
                %318 = vst [vmem:[%s118 + $0x318] sm:$0xff] %v317
                %v319 = vld [vmem:[%s117 + $0x620] sm:$0xff]
                %320 = vst [vmem:[%s118 + $0x320] sm:$0xff] %v319
                %v321 = vld [vmem:[%s117 + $0x628] sm:$0xff]
                %322 = vst [vmem:[%s118 + $0x328] sm:$0xff] %v321
                %v323 = vld [vmem:[%s117 + $0x630] sm:$0xff]
                %324 = vst [vmem:[%s118 + $0x330] sm:$0xff] %v323
                %v325 = vld [vmem:[%s117 + $0x638] sm:$0xff]
                %326 = vst [vmem:[%s118 + $0x338] sm:$0xff] %v325
                %v327 = vld [vmem:[%s117 + $0x640] sm:$0xff]
                %328 = vst [vmem:[%s118 + $0x340] sm:$0xff] %v327
                %v329 = vld [vmem:[%s117 + $0x648] sm:$0xff]
                %330 = vst [vmem:[%s118 + $0x348] sm:$0xff] %v329
                %v331 = vld [vmem:[%s117 + $0x650] sm:$0xff]
                %332 = vst [vmem:[%s118 + $0x350] sm:$0xff] %v331
                %v333 = vld [vmem:[%s117 + $0x658] sm:$0xff]
                %334 = vst [vmem:[%s118 + $0x358] sm:$0xff] %v333
                %v335 = vld [vmem:[%s117 + $0x660] sm:$0xff]
                %336 = vst [vmem:[%s118 + $0x360] sm:$0xff] %v335
                %v337 = vld [vmem:[%s117 + $0x668] sm:$0xff]
                %338 = vst [vmem:[%s118 + $0x368] sm:$0xff] %v337
                %v339 = vld [vmem:[%s117 + $0x670] sm:$0xff]
                %340 = vst [vmem:[%s118 + $0x370] sm:$0xff] %v339
                %v341 = vld [vmem:[%s117 + $0x678] sm:$0xff]
                %342 = vst [vmem:[%s118 + $0x378] sm:$0xff] %v341
                %v343 = vld [vmem:[%s117 + $0x700] sm:$0xff]
                %344 = vst [vmem:[%s118 + $0x380] sm:$0xff] %v343
                %v345 = vld [vmem:[%s117 + $0x708] sm:$0xff]
                %346 = vst [vmem:[%s118 + $0x388] sm:$0xff] %v345
                %v347 = vld [vmem:[%s117 + $0x710] sm:$0xff]
                %348 = vst [vmem:[%s118 + $0x390] sm:$0xff] %v347
                %v349 = vld [vmem:[%s117 + $0x718] sm:$0xff]
                %350 = vst [vmem:[%s118 + $0x398] sm:$0xff] %v349
                %v351 = vld [vmem:[%s117 + $0x720] sm:$0xff]
                %352 = vst [vmem:[%s118 + $0x3a0] sm:$0xff] %v351
                %v353 = vld [vmem:[%s117 + $0x728] sm:$0xff]
                %354 = vst [vmem:[%s118 + $0x3a8] sm:$0xff] %v353
                %v355 = vld [vmem:[%s117 + $0x730] sm:$0xff]
                %356 = vst [vmem:[%s118 + $0x3b0] sm:$0xff] %v355
                %v357 = vld [vmem:[%s117 + $0x738] sm:$0xff]
                %358 = vst [vmem:[%s118 + $0x3b8] sm:$0xff] %v357
                %v359 = vld [vmem:[%s117 + $0x740] sm:$0xff]
                %360 = vst [vmem:[%s118 + $0x3c0] sm:$0xff] %v359
                %v361 = vld [vmem:[%s117 + $0x748] sm:$0xff]
                %362 = vst [vmem:[%s118 + $0x3c8] sm:$0xff] %v361
                %v363 = vld [vmem:[%s117 + $0x750] sm:$0xff]
                %364 = vst [vmem:[%s118 + $0x3d0] sm:$0xff] %v363
                %v365 = vld [vmem:[%s117 + $0x758] sm:$0xff]
                %366 = vst [vmem:[%s118 + $0x3d8] sm:$0xff] %v365
                %v367 = vld [vmem:[%s117 + $0x760] sm:$0xff]
                %368 = vst [vmem:[%s118 + $0x3e0] sm:$0xff] %v367
                %v369 = vld [vmem:[%s117 + $0x768] sm:$0xff]
                %370 = vst [vmem:[%s118 + $0x3e8] sm:$0xff] %v369
                %v371 = vld [vmem:[%s117 + $0x770] sm:$0xff]
                %372 = vst [vmem:[%s118 + $0x3f0] sm:$0xff] %v371
                %v373 = vld [vmem:[%s117 + $0x778] sm:$0xff]
                %374 = vst [vmem:[%s118 + $0x3f8] sm:$0xff] %v373
              $region33: #{channel_attention_pallas.2} parent=27 // loop_footer
                %s116 = sadd.s32 1, %s112
              $region34: #{channel_attention_pallas.2} parent=27 // loop_footer_branch
                %111 = sbr.rel target = $region30
              $region35: #{channel_attention_pallas.2} parent=27 // loop_exit
                _
            $region28: #{channel_attention_pallas.2} parent=23 // pred_fallthru
              _
            // Predicated region
            $region36: #{channel_attention_pallas.2} parent=23 // pred_check
              _
            $region37: #{channel_attention_pallas.2} parent=23 // pred_check_branch
              %376 = sbr.rel target = $region39
            $region38: #{channel_attention_pallas.2} parent=23 // pred_region
              _
            $region39: #{channel_attention_pallas.2} parent=23 // pred_fallthru
              _
          $region24: #{channel_attention_pallas.2} parent=19 // pred_fallthru
            _
          %377 = vnop
        $region20: #{channel_attention_pallas.2} parent=15 // pred_fallthru
          _
      $region16: #{channel_attention_pallas.2} parent=5 // pred_fallthru
        _
      %p378 = scmp.le.s32.totalorder 1, %s7
      %p379 = scmp.lt.s32.totalorder %s7, 3
      %p380 = pnand %p378, %p379
      %p381 = pneg %p380
      // Predicated region
      $region40: #{channel_attention_pallas.2} parent=5 // pred_check
        _
      $region41: #{channel_attention_pallas.2} parent=5 // pred_check_branch
        %383 = sbr.rel (%p380) target = $region43
      $region42: #{channel_attention_pallas.2} parent=5 // pred_region
        %s384 = ssub.s32 %s7, 1
        %s385 = sand.u32 %s34, 1
        %s386 = sand.u32 %s34, 1
        %s387 = smul.addr %s386, 1024
        %s388 = scalar_lea.vmem [#allocation2], %s387
        // Predicated region
        $region44: #{channel_attention_pallas.2} parent=42 // pred_check
          %p389 = pneg %p47
        $region45: #{channel_attention_pallas.2} parent=42 // pred_check_branch
          %391 = sbr.rel (%p389) target = $region47
        $region46: #{channel_attention_pallas.2} parent=42 // pred_region
          _
        $region47: #{channel_attention_pallas.2} parent=42 // pred_fallthru
          _
        %s392 = sand.u32 %s34, 1
        %s393 = sand.u32 %s34, 1
        %s394 = smul.addr %s393, 1024
        %s395 = scalar_lea.vmem [#allocation2], %s394
        %p396 = pneg %p47
        %p397 = pneg %p44
        %p398 = pneg %p75
        %p399 = pneg %p72
        %s400 = smul.u32 8, %s16
        %p401 = scmp.lt.s32.totalorder %s17, 1
        %s402 = scalar_select %p401, %s17, 1
        %p403 = scmp.lt.s32.totalorder %s400, 7
        %s404 = scalar_select %p403, %s400, 7
        %s405 = smul.addr %s402, 8
        %s406 = sadd.s32 %s404, %s405
        %s407 = smul.addr %s406, 8
        %s408 = scalar_lea.vmem %s1, %s407
        %s409 = smul.u32 8, %s16
        %s410 = smul.u32 16, %s17
        %s411 = smul.u32 8, %s16
        %p412 = scmp.lt.s32.totalorder %s17, 1
        %s413 = scalar_select %p412, %s17, 1
        %p414 = scmp.lt.s32.totalorder %s411, 7
        %s415 = scalar_select %p414, %s411, 7
        %s416 = smul.addr %s413, 8
        %s417 = sadd.s32 %s415, %s416
        %s418 = smul.addr %s417, 8
        %s419 = scalar_lea.vmem %s1, %s418
        %s420 = smul.u32 8, %s16
        %v421 = vld [vmem:[%s388] sm:$0xff]
        %v422 = vld [vmem:[%s388 + $0x8] sm:$0xff]
        %v423 = vld [vmem:[%s388 + $0x10] sm:$0xff]
        %v424 = vld [vmem:[%s388 + $0x18] sm:$0xff]
        %v425 = vld [vmem:[%s388 + $0x20] sm:$0xff]
        %v426 = vld [vmem:[%s388 + $0x28] sm:$0xff]
        %v427 = vld [vmem:[%s388 + $0x30] sm:$0xff]
        %v428 = vld [vmem:[%s388 + $0x38] sm:$0xff]
        %v429 = vld [vmem:[%s388 + $0x40] sm:$0xff]
        %v430 = vld [vmem:[%s388 + $0x48] sm:$0xff]
        %v431 = vld [vmem:[%s388 + $0x50] sm:$0xff]
        %v432 = vld [vmem:[%s388 + $0x58] sm:$0xff]
        %v433 = vld [vmem:[%s388 + $0x60] sm:$0xff]
        %v434 = vld [vmem:[%s388 + $0x68] sm:$0xff]
        %v435 = vld [vmem:[%s388 + $0x70] sm:$0xff]
        %v436 = vld [vmem:[%s388 + $0x78] sm:$0xff]
        %v437 = vld [vmem:[%s388 + $0x80] sm:$0xff]
        %v438 = vld [vmem:[%s388 + $0x88] sm:$0xff]
        %v439 = vld [vmem:[%s388 + $0x90] sm:$0xff]
        %v440 = vld [vmem:[%s388 + $0x98] sm:$0xff]
        %v441 = vld [vmem:[%s388 + $0xa0] sm:$0xff]
        %v442 = vld [vmem:[%s388 + $0xa8] sm:$0xff]
        %v443 = vld [vmem:[%s388 + $0xb0] sm:$0xff]
        %v444 = vld [vmem:[%s388 + $0xb8] sm:$0xff]
        %v445 = vld [vmem:[%s388 + $0xc0] sm:$0xff]
        %v446 = vld [vmem:[%s388 + $0xc8] sm:$0xff]
        %v447 = vld [vmem:[%s388 + $0xd0] sm:$0xff]
        %v448 = vld [vmem:[%s388 + $0xd8] sm:$0xff]
        %v449 = vld [vmem:[%s388 + $0xe0] sm:$0xff]
        %v450 = vld [vmem:[%s388 + $0xe8] sm:$0xff]
        %v451 = vld [vmem:[%s388 + $0xf0] sm:$0xff]
        %v452 = vld [vmem:[%s388 + $0xf8] sm:$0xff]
        %v453 = vld [vmem:[%s388 + $0x100] sm:$0xff]
        %v454 = vld [vmem:[%s388 + $0x108] sm:$0xff]
        %v455 = vld [vmem:[%s388 + $0x110] sm:$0xff]
        %v456 = vld [vmem:[%s388 + $0x118] sm:$0xff]
        %v457 = vld [vmem:[%s388 + $0x120] sm:$0xff]
        %v458 = vld [vmem:[%s388 + $0x128] sm:$0xff]
        %v459 = vld [vmem:[%s388 + $0x130] sm:$0xff]
        %v460 = vld [vmem:[%s388 + $0x138] sm:$0xff]
        %v461 = vld [vmem:[%s388 + $0x140] sm:$0xff]
        %v462 = vld [vmem:[%s388 + $0x148] sm:$0xff]
        %v463 = vld [vmem:[%s388 + $0x150] sm:$0xff]
        %v464 = vld [vmem:[%s388 + $0x158] sm:$0xff]
        %v465 = vld [vmem:[%s388 + $0x160] sm:$0xff]
        %v466 = vld [vmem:[%s388 + $0x168] sm:$0xff]
        %v467 = vld [vmem:[%s388 + $0x170] sm:$0xff]
        %v468 = vld [vmem:[%s388 + $0x178] sm:$0xff]
        %v469 = vld [vmem:[%s388 + $0x180] sm:$0xff]
        %v470 = vld [vmem:[%s388 + $0x188] sm:$0xff]
        %v471 = vld [vmem:[%s388 + $0x190] sm:$0xff]
        %v472 = vld [vmem:[%s388 + $0x198] sm:$0xff]
        %v473 = vld [vmem:[%s388 + $0x1a0] sm:$0xff]
        %v474 = vld [vmem:[%s388 + $0x1a8] sm:$0xff]
        %v475 = vld [vmem:[%s388 + $0x1b0] sm:$0xff]
        %v476 = vld [vmem:[%s388 + $0x1b8] sm:$0xff]
        %v477 = vld [vmem:[%s388 + $0x1c0] sm:$0xff]
        %v478 = vld [vmem:[%s388 + $0x1c8] sm:$0xff]
        %v479 = vld [vmem:[%s388 + $0x1d0] sm:$0xff]
        %v480 = vld [vmem:[%s388 + $0x1d8] sm:$0xff]
        %v481 = vld [vmem:[%s388 + $0x1e0] sm:$0xff]
        %v482 = vld [vmem:[%s388 + $0x1e8] sm:$0xff]
        %v483 = vld [vmem:[%s388 + $0x1f0] sm:$0xff]
        %v484 = vld [vmem:[%s388 + $0x1f8] sm:$0xff]
        %v485 = vld [vmem:[%s388 + $0x200] sm:$0xff]
        %v486 = vld [vmem:[%s388 + $0x208] sm:$0xff]
        %v487 = vld [vmem:[%s388 + $0x210] sm:$0xff]
        %v488 = vld [vmem:[%s388 + $0x218] sm:$0xff]
        %v489 = vld [vmem:[%s388 + $0x220] sm:$0xff]
        %v490 = vld [vmem:[%s388 + $0x228] sm:$0xff]
        %v491 = vld [vmem:[%s388 + $0x230] sm:$0xff]
        %v492 = vld [vmem:[%s388 + $0x238] sm:$0xff]
        %v493 = vld [vmem:[%s388 + $0x240] sm:$0xff]
        %v494 = vld [vmem:[%s388 + $0x248] sm:$0xff]
        %v495 = vld [vmem:[%s388 + $0x250] sm:$0xff]
        %v496 = vld [vmem:[%s388 + $0x258] sm:$0xff]
        %v497 = vld [vmem:[%s388 + $0x260] sm:$0xff]
        %v498 = vld [vmem:[%s388 + $0x268] sm:$0xff]
        %v499 = vld [vmem:[%s388 + $0x270] sm:$0xff]
        %v500 = vld [vmem:[%s388 + $0x278] sm:$0xff]
        %v501 = vld [vmem:[%s388 + $0x280] sm:$0xff]
        %v502 = vld [vmem:[%s388 + $0x288] sm:$0xff]
        %v503 = vld [vmem:[%s388 + $0x290] sm:$0xff]
        %v504 = vld [vmem:[%s388 + $0x298] sm:$0xff]
        %v505 = vld [vmem:[%s388 + $0x2a0] sm:$0xff]
        %v506 = vld [vmem:[%s388 + $0x2a8] sm:$0xff]
        %v507 = vld [vmem:[%s388 + $0x2b0] sm:$0xff]
        %v508 = vld [vmem:[%s388 + $0x2b8] sm:$0xff]
        %v509 = vld [vmem:[%s388 + $0x2c0] sm:$0xff]
        %v510 = vld [vmem:[%s388 + $0x2c8] sm:$0xff]
        %v511 = vld [vmem:[%s388 + $0x2d0] sm:$0xff]
        %v512 = vld [vmem:[%s388 + $0x2d8] sm:$0xff]
        %v513 = vld [vmem:[%s388 + $0x2e0] sm:$0xff]
        %v514 = vld [vmem:[%s388 + $0x2e8] sm:$0xff]
        %v515 = vld [vmem:[%s388 + $0x2f0] sm:$0xff]
        %v516 = vld [vmem:[%s388 + $0x2f8] sm:$0xff]
        %v517 = vld [vmem:[%s388 + $0x300] sm:$0xff]
        %v518 = vld [vmem:[%s388 + $0x308] sm:$0xff]
        %v519 = vld [vmem:[%s388 + $0x310] sm:$0xff]
        %v520 = vld [vmem:[%s388 + $0x318] sm:$0xff]
        %v521 = vld [vmem:[%s388 + $0x320] sm:$0xff]
        %v522 = vld [vmem:[%s388 + $0x328] sm:$0xff]
        %v523 = vld [vmem:[%s388 + $0x330] sm:$0xff]
        %v524 = vld [vmem:[%s388 + $0x338] sm:$0xff]
        %v525 = vld [vmem:[%s388 + $0x340] sm:$0xff]
        %v526 = vld [vmem:[%s388 + $0x348] sm:$0xff]
        %v527 = vld [vmem:[%s388 + $0x350] sm:$0xff]
        %v528 = vld [vmem:[%s388 + $0x358] sm:$0xff]
        %v529 = vld [vmem:[%s388 + $0x360] sm:$0xff]
        %v530 = vld [vmem:[%s388 + $0x368] sm:$0xff]
        %v531 = vld [vmem:[%s388 + $0x370] sm:$0xff]
        %v532 = vld [vmem:[%s388 + $0x378] sm:$0xff]
        %v533 = vld [vmem:[%s388 + $0x380] sm:$0xff]
        %v534 = vld [vmem:[%s388 + $0x388] sm:$0xff]
        %v535 = vld [vmem:[%s388 + $0x390] sm:$0xff]
        %v536 = vld [vmem:[%s388 + $0x398] sm:$0xff]
        %v537 = vld [vmem:[%s388 + $0x3a0] sm:$0xff]
        %v538 = vld [vmem:[%s388 + $0x3a8] sm:$0xff]
        %v539 = vld [vmem:[%s388 + $0x3b0] sm:$0xff]
        %v540 = vld [vmem:[%s388 + $0x3b8] sm:$0xff]
        %v541 = vld [vmem:[%s388 + $0x3c0] sm:$0xff]
        %v542 = vld [vmem:[%s388 + $0x3c8] sm:$0xff]
        %v543 = vld [vmem:[%s388 + $0x3d0] sm:$0xff]
        %v544 = vld [vmem:[%s388 + $0x3d8] sm:$0xff]
        %v545 = vld [vmem:[%s388 + $0x3e0] sm:$0xff]
        %v546 = vld [vmem:[%s388 + $0x3e8] sm:$0xff]
        %v547 = vld [vmem:[%s388 + $0x3f0] sm:$0xff]
        %v548 = vld [vmem:[%s388 + $0x3f8] sm:$0xff]
        %v549 = vadd.f32 %v421, %v422
        %v550 = vadd.f32 %v549, %v423
        %v551 = vadd.f32 %v550, %v424
        %v552 = vadd.f32 %v551, %v425
        %v553 = vadd.f32 %v552, %v426
        %v554 = vadd.f32 %v553, %v427
        %v555 = vadd.f32 %v554, %v428
        %v556 = vadd.f32 %v555, %v429
        %v557 = vadd.f32 %v556, %v430
        %v558 = vadd.f32 %v557, %v431
        %v559 = vadd.f32 %v558, %v432
        %v560 = vadd.f32 %v559, %v433
        %v561 = vadd.f32 %v560, %v434
        %v562 = vadd.f32 %v561, %v435
        %v563 = vadd.f32 %v562, %v436
        %564 = vadd.xlane.f32.xlu0 %v563
        %v565 = vpop.xlane.xlu0 %564
        %v566 = vadd.f32 %v437, %v438
        %v567 = vadd.f32 %v566, %v439
        %v568 = vadd.f32 %v567, %v440
        %v569 = vadd.f32 %v568, %v441
        %v570 = vadd.f32 %v569, %v442
        %v571 = vadd.f32 %v570, %v443
        %v572 = vadd.f32 %v571, %v444
        %v573 = vadd.f32 %v572, %v445
        %v574 = vadd.f32 %v573, %v446
        %v575 = vadd.f32 %v574, %v447
        %v576 = vadd.f32 %v575, %v448
        %v577 = vadd.f32 %v576, %v449
        %v578 = vadd.f32 %v577, %v450
        %v579 = vadd.f32 %v578, %v451
        %v580 = vadd.f32 %v579, %v452
        %581 = vadd.xlane.f32.xlu0 %v580
        %v582 = vpop.xlane.xlu0 %581
        %v583 = vadd.f32 %v453, %v454
        %v584 = vadd.f32 %v583, %v455
        %v585 = vadd.f32 %v584, %v456
        %v586 = vadd.f32 %v585, %v457
        %v587 = vadd.f32 %v586, %v458
        %v588 = vadd.f32 %v587, %v459
        %v589 = vadd.f32 %v588, %v460
        %v590 = vadd.f32 %v589, %v461
        %v591 = vadd.f32 %v590, %v462
        %v592 = vadd.f32 %v591, %v463
        %v593 = vadd.f32 %v592, %v464
        %v594 = vadd.f32 %v593, %v465
        %v595 = vadd.f32 %v594, %v466
        %v596 = vadd.f32 %v595, %v467
        %v597 = vadd.f32 %v596, %v468
        %598 = vadd.xlane.f32.xlu0 %v597
        %v599 = vpop.xlane.xlu0 %598
        %v600 = vadd.f32 %v469, %v470
        %v601 = vadd.f32 %v600, %v471
        %v602 = vadd.f32 %v601, %v472
        %v603 = vadd.f32 %v602, %v473
        %v604 = vadd.f32 %v603, %v474
        %v605 = vadd.f32 %v604, %v475
        %v606 = vadd.f32 %v605, %v476
        %v607 = vadd.f32 %v606, %v477
        %v608 = vadd.f32 %v607, %v478
        %v609 = vadd.f32 %v608, %v479
        %v610 = vadd.f32 %v609, %v480
        %v611 = vadd.f32 %v610, %v481
        %v612 = vadd.f32 %v611, %v482
        %v613 = vadd.f32 %v612, %v483
        %v614 = vadd.f32 %v613, %v484
        %615 = vadd.xlane.f32.xlu0 %v614
        %v616 = vpop.xlane.xlu0 %615
        %v617 = vadd.f32 %v485, %v486
        %v618 = vadd.f32 %v617, %v487
        %v619 = vadd.f32 %v618, %v488
        %v620 = vadd.f32 %v619, %v489
        %v621 = vadd.f32 %v620, %v490
        %v622 = vadd.f32 %v621, %v491
        %v623 = vadd.f32 %v622, %v492
        %v624 = vadd.f32 %v623, %v493
        %v625 = vadd.f32 %v624, %v494
        %v626 = vadd.f32 %v625, %v495
        %v627 = vadd.f32 %v626, %v496
        %v628 = vadd.f32 %v627, %v497
        %v629 = vadd.f32 %v628, %v498
        %v630 = vadd.f32 %v629, %v499
        %v631 = vadd.f32 %v630, %v500
        %632 = vadd.xlane.f32.xlu0 %v631
        %v633 = vpop.xlane.xlu0 %632
        %v634 = vadd.f32 %v501, %v502
        %v635 = vadd.f32 %v634, %v503
        %v636 = vadd.f32 %v635, %v504
        %v637 = vadd.f32 %v636, %v505
        %v638 = vadd.f32 %v637, %v506
        %v639 = vadd.f32 %v638, %v507
        %v640 = vadd.f32 %v639, %v508
        %v641 = vadd.f32 %v640, %v509
        %v642 = vadd.f32 %v641, %v510
        %v643 = vadd.f32 %v642, %v511
        %v644 = vadd.f32 %v643, %v512
        %v645 = vadd.f32 %v644, %v513
        %v646 = vadd.f32 %v645, %v514
        %v647 = vadd.f32 %v646, %v515
        %v648 = vadd.f32 %v647, %v516
        %649 = vadd.xlane.f32.xlu0 %v648
        %v650 = vpop.xlane.xlu0 %649
        %v651 = vadd.f32 %v517, %v518
        %v652 = vadd.f32 %v651, %v519
        %v653 = vadd.f32 %v652, %v520
        %v654 = vadd.f32 %v653, %v521
        %v655 = vadd.f32 %v654, %v522
        %v656 = vadd.f32 %v655, %v523
        %v657 = vadd.f32 %v656, %v524
        %v658 = vadd.f32 %v657, %v525
        %v659 = vadd.f32 %v658, %v526
        %v660 = vadd.f32 %v659, %v527
        %v661 = vadd.f32 %v660, %v528
        %v662 = vadd.f32 %v661, %v529
        %v663 = vadd.f32 %v662, %v530
        %v664 = vadd.f32 %v663, %v531
        %v665 = vadd.f32 %v664, %v532
        %666 = vadd.xlane.f32.xlu0 %v665
        %v667 = vpop.xlane.xlu0 %666
        %v668 = vadd.f32 %v533, %v534
        %v669 = vadd.f32 %v668, %v535
        %v670 = vadd.f32 %v669, %v536
        %v671 = vadd.f32 %v670, %v537
        %v672 = vadd.f32 %v671, %v538
        %v673 = vadd.f32 %v672, %v539
        %v674 = vadd.f32 %v673, %v540
        %v675 = vadd.f32 %v674, %v541
        %v676 = vadd.f32 %v675, %v542
        %v677 = vadd.f32 %v676, %v543
        %v678 = vadd.f32 %v677, %v544
        %v679 = vadd.f32 %v678, %v545
        %v680 = vadd.f32 %v679, %v546
        %v681 = vadd.f32 %v680, %v547
        %v682 = vadd.f32 %v681, %v548
        %683 = vadd.xlane.f32.xlu0 %v682
        %v684 = vpop.xlane.xlu0 %683
        %vm685 = vcmask 7168
        %686 = vst.msk [vmem:[%s419] sm:$0xff] %vm685, %v565
        %687 = vst.msk [vmem:[%s419 + $0x8] sm:$0xff] %vm685, %v582
        %688 = vst.msk [vmem:[%s419 + $0x10] sm:$0xff] %vm685, %v599
        %689 = vst.msk [vmem:[%s419 + $0x18] sm:$0xff] %vm685, %v616
        %690 = vst.msk [vmem:[%s419 + $0x20] sm:$0xff] %vm685, %v633
        %691 = vst.msk [vmem:[%s419 + $0x28] sm:$0xff] %vm685, %v650
        %692 = vst.msk [vmem:[%s419 + $0x30] sm:$0xff] %vm685, %v667
        %693 = vst.msk [vmem:[%s419 + $0x38] sm:$0xff] %vm685, %v684
        %s694 = smul.u32 8, %s16
        %p695 = scmp.lt.s32.totalorder %s17, 1
        %s696 = scalar_select %p695, %s17, 1
        %p697 = scmp.lt.s32.totalorder %s694, 7
        %s698 = scalar_select %p697, %s694, 7
        %s699 = smul.addr %s696, 8
        %s700 = sadd.s32 %s698, %s699
        %s701 = smul.addr %s700, 8
        %s702 = scalar_lea.vmem %s1, %s701
        // Predicated region
        $region48: #{channel_attention_pallas.2} parent=42 // pred_check
          %p703 = pneg %p72
        $region49: #{channel_attention_pallas.2} parent=42 // pred_check_branch
          %705 = sbr.rel (%p703) target = $region51
        $region50: #{channel_attention_pallas.2} parent=42 // pred_region
          %s706 = smul.u32 8, %s16
        $region51: #{channel_attention_pallas.2} parent=42 // pred_fallthru
          _
      $region43: #{channel_attention_pallas.2} parent=5 // pred_fallthru
        _
      %p707 = scmp.le.s32.totalorder 2, %s7
      // Predicated region
      $region52: #{channel_attention_pallas.2} parent=5 // pred_check
        %p708 = pneg %p707
      $region53: #{channel_attention_pallas.2} parent=5 // pred_check_branch
        %710 = sbr.rel (%p708) target = $region55
      $region54: #{channel_attention_pallas.2} parent=5 // pred_region
        %s711 = ssub.s32 %s7, 2
        // Predicated region
        $region56: #{channel_attention_pallas.2} parent=54 // pred_check
          %p712 = pneg %p78
        $region57: #{channel_attention_pallas.2} parent=54 // pred_check_branch
          %714 = sbr.rel (%p712) target = $region59
        $region58: #{channel_attention_pallas.2} parent=54 // pred_region
          %s715 = smul.u32 8, %s18
          %p716 = scmp.lt.s32.totalorder %s19, 1
          %s717 = scalar_select %p716, %s19, 1
          %p718 = scmp.lt.s32.totalorder %s715, 7
          %s719 = scalar_select %p718, %s715, 7
          %s720 = smul.addr %s717, 8
          %s721 = sadd.s32 %s719, %s720
          %s722 = smul.addr %s721, 8
          %s723 = scalar_lea.vmem %s1, %s722
        $region59: #{channel_attention_pallas.2} parent=54 // pred_fallthru
          _
      $region55: #{channel_attention_pallas.2} parent=5 // pred_fallthru
        _
    $region6: #{channel_attention_pallas.2} parent=1 // loop_footer
      %s11 = sadd.s32 1, %s7
    $region7: #{channel_attention_pallas.2} parent=1 // loop_footer_branch
      %6 = sbr.rel target = $region3
    $region8: #{channel_attention_pallas.2} parent=1 // loop_exit
      _

// kernel: channel_attention_pallas.3
$region0: #{channel_attention_pallas.3}
  #allocation0 [shape = 'u32[]', space=smem, size = 0x4, offset = 0x4, fixed_abs, tag = 'smem constant byte address 0x4 - core index']
  #allocation1 [shape = 'u32[144,128]{1,0:T(1,128)}', space=vmem, size = 0x12000, scoped, tag = 'internal scratch']
  %s0 = inlined_call_operand.vmem [shape: f32[2,64,1], index: 0, kind: input, shape index: {}]
  %s1 = inlined_call_operand.vmem [shape: f32[4,64], index: 1, kind: input, shape index: {}]
  %s2 = inlined_call_operand.vmem [shape: f32[64,4], index: 2, kind: input, shape index: {}]
  %s3 = inlined_call_operand.vmem [shape: f32[64,4096], index: 3, kind: input, shape index: {}]
  %s4 = inlined_call_operand.vmem [shape: f32[64,4096], index: 4, kind: output, shape index: {}]
  %s5 = sld [smem:[#allocation0]]
  $region91: #{channel_attention_pallas.3} parent=0
    _
  %s7 = ssub.s32 1, %s5
  %s8 = scalar_select 0, %s7, %s5
  $region1: #{channel_attention_pallas.3} parent=0
    #allocation2 [shape = 'u8[1048576]{0}', space=vmem, size = 0x100000, scoped, tag = 'input window, operand 3']
    #allocation3 [shape = 'u8[1048576]{0}', space=vmem, size = 0x100000, scoped, tag = 'output window, operand 0']
    loop: start=0, step=1, limit=4
    $region2: #{channel_attention_pallas.3} parent=1 // loop_pre_header
      _
    $region3: #{channel_attention_pallas.3} parent=1 // loop_header
      %s10 = sphi 0, %s14
      %p11 = scmp.ge.s32.totalorder %s10, 4
      %s17 = sphi 0, %s29
      %s18 = sphi 0, %s25
      %s19 = sphi 0, %s17
      %s20 = sphi 0, %s18
      %s21 = sphi 0, %s19
      %s22 = sphi 0, %s20
      %s30 = sphi 0, %s30
      %s32 = sphi 0, %s30
      %s33 = sphi 0, %s32
      %s47 = sphi 0, %s33
      %s51 = sphi 0, %s51
      %s53 = sphi 0, %s51
      %s54 = sphi 0, %s53
      %s68 = sphi 0, %s54
      %s74 = sphi 0, %s76
      %s77 = sphi 0, %s74
      %s78 = sphi 0, %s77
      %s94 = sphi 0, %s78
      %s102 = sphi 0, %s104
      %s105 = sphi 0, %s102
      %s106 = sphi 0, %s105
      %s122 = sphi 0, %s106
      %s130 = sphi 0, %s132
      %s133 = sphi 0, %s130
      %s134 = sphi 0, %s133
      %s150 = sphi 0, %s134
    $region4: #{channel_attention_pallas.3} parent=1 // loop_header_branch
      %13 = sbr.rel (%p11) target = $region8
    $region5: #{channel_attention_pallas.3} parent=1 // loop_body
      %s15 = ssub.s32 %s10, 1
      %s16 = ssub.s32 %s10, 2
      %s23 = sadd.s32 1, %s18
      %p24 = scmp.ge.s32.totalorder %s23, 2
      %s25 = scalar_select %p24, 0, %s23
      %s26 = sadd.s32 1, %s17
      %s27 = scalar_select %p24, %s26, %s17
      %p28 = scmp.ge.s32.totalorder %s27, 1
      %s29 = scalar_select %p28, 0, %s27
      %s31 = sadd.s32 %s30, 1
      %p34 = scmp.eq.s32.totalorder %s10, 1
      %p35 = scmp.ne.s32.totalorder %s30, %s32
      %p36 = scmp.eq.s32.totalorder %s10, 0
      %p37 = por %p35, %p36
      %p38 = scmp.ne.s32.totalorder %s30, %s32
      %p39 = scmp.eq.s32.totalorder %s15, 1
      %p40 = por %p38, %p39
      %p41 = scmp.ne.s32.totalorder %s32, %s33
      %p42 = scmp.eq.s32.totalorder %s15, 0
      %p43 = por %p41, %p42
      %p44 = scmp.ne.s32.totalorder %s32, %s33
      %p45 = scmp.eq.s32.totalorder %s16, 1
      %p46 = por %p44, %p45
      %p48 = scmp.ne.s32.totalorder %s33, %s47
      %p49 = scmp.eq.s32.totalorder %s16, 0
      %p50 = por %p48, %p49
      %s52 = sadd.s32 %s51, 1
      %p55 = scmp.eq.s32.totalorder %s10, 1
      %p56 = scmp.ne.s32.totalorder %s51, %s53
      %p57 = scmp.eq.s32.totalorder %s10, 0
      %p58 = por %p56, %p57
      %p59 = scmp.ne.s32.totalorder %s51, %s53
      %p60 = scmp.eq.s32.totalorder %s15, 1
      %p61 = por %p59, %p60
      %p62 = scmp.ne.s32.totalorder %s53, %s54
      %p63 = scmp.eq.s32.totalorder %s15, 0
      %p64 = por %p62, %p63
      %p65 = scmp.ne.s32.totalorder %s53, %s54
      %p66 = scmp.eq.s32.totalorder %s16, 1
      %p67 = por %p65, %p66
      %p69 = scmp.ne.s32.totalorder %s54, %s68
      %p70 = scmp.eq.s32.totalorder %s16, 0
      %p71 = por %p69, %p70
      %s72 = ssub.s32 %s17, %s29
      %p73 = scmp.eq.s32.totalorder %s72, 0
      %s75 = sadd.s32 %s74, 1
      %s76 = scalar_select %p73, %s74, %s75
      %p79 = pneg %p73
      %p80 = scmp.eq.s32.totalorder %s10, 1
      %p81 = por %p79, %p80
      %p82 = scmp.ne.s32.totalorder %s74, %s77
      %p83 = scmp.eq.s32.totalorder %s10, 0
      %p84 = por %p82, %p83
      %p85 = scmp.ne.s32.totalorder %s74, %s77
      %p86 = scmp.eq.s32.totalorder %s15, 1
      %p87 = por %p85, %p86
      %p88 = scmp.ne.s32.totalorder %s77, %s78
      %p89 = scmp.eq.s32.totalorder %s15, 0
      %p90 = por %p88, %p89
      %p91 = scmp.ne.s32.totalorder %s77, %s78
      %p92 = scmp.eq.s32.totalorder %s16, 1
      %p93 = por %p91, %p92
      %p95 = scmp.ne.s32.totalorder %s78, %s94
      %p96 = scmp.eq.s32.totalorder %s16, 0
      %p97 = por %p95, %p96
      %s98 = ssub.s32 %s17, %s29
      %s99 = ssub.s32 %s18, %s25
      %s100 = sor.u32 %s98, %s99
      %p101 = scmp.eq.s32.totalorder %s100, 0
      %s103 = sadd.s32 %s102, 1
      %s104 = scalar_select %p101, %s102, %s103
      %p107 = pneg %p101
      %p108 = scmp.eq.s32.totalorder %s10, 1
      %p109 = por %p107, %p108
      %p110 = scmp.ne.s32.totalorder %s102, %s105
      %p111 = scmp.eq.s32.totalorder %s10, 0
      %p112 = por %p110, %p111
      %p113 = scmp.ne.s32.totalorder %s102, %s105
      %p114 = scmp.eq.s32.totalorder %s15, 1
      %p115 = por %p113, %p114
      %p116 = scmp.ne.s32.totalorder %s105, %s106
      %p117 = scmp.eq.s32.totalorder %s15, 0
      %p118 = por %p116, %p117
      %p119 = scmp.ne.s32.totalorder %s105, %s106
      %p120 = scmp.eq.s32.totalorder %s16, 1
      %p121 = por %p119, %p120
      %p123 = scmp.ne.s32.totalorder %s106, %s122
      %p124 = scmp.eq.s32.totalorder %s16, 0
      %p125 = por %p123, %p124
      %s126 = ssub.s32 %s17, %s29
      %s127 = ssub.s32 %s18, %s25
      %s128 = sor.u32 %s126, %s127
      %p129 = scmp.eq.s32.totalorder %s128, 0
      %s131 = sadd.s32 %s130, 1
      %s132 = scalar_select %p129, %s130, %s131
      %p135 = pneg %p129
      %p136 = scmp.eq.s32.totalorder %s10, 1
      %p137 = por %p135, %p136
      %p138 = scmp.ne.s32.totalorder %s130, %s133
      %p139 = scmp.eq.s32.totalorder %s10, 0
      %p140 = por %p138, %p139
      %p141 = scmp.ne.s32.totalorder %s130, %s133
      %p142 = scmp.eq.s32.totalorder %s15, 1
      %p143 = por %p141, %p142
      %p144 = scmp.ne.s32.totalorder %s133, %s134
      %p145 = scmp.eq.s32.totalorder %s15, 0
      %p146 = por %p144, %p145
      %p147 = scmp.ne.s32.totalorder %s133, %s134
      %p148 = scmp.eq.s32.totalorder %s16, 1
      %p149 = por %p147, %p148
      %p151 = scmp.ne.s32.totalorder %s134, %s150
      %p152 = scmp.eq.s32.totalorder %s16, 0
      %p153 = por %p151, %p152
      %p154 = scmp.le.s32.totalorder 1, %s10
      %p155 = scmp.lt.s32.totalorder %s10, 3
      %p156 = pnand %p154, %p155
      %p157 = pneg %p156
      // Predicated region
      $region9: #{channel_attention_pallas.3} parent=5 // pred_check
        _
      $region10: #{channel_attention_pallas.3} parent=5 // pred_check_branch
        %159 = sbr.rel (%p156) target = $region12
      $region11: #{channel_attention_pallas.3} parent=5 // pred_region
        %s160 = ssub.s32 %s10, 1
        // Predicated region
        $region13: #{channel_attention_pallas.3} parent=11 // pred_check
          %p161 = pneg %p43
        $region14: #{channel_attention_pallas.3} parent=11 // pred_check_branch
          %163 = sbr.rel (%p161) target = $region16
        $region15: #{channel_attention_pallas.3} parent=11 // pred_region
          _
        $region16: #{channel_attention_pallas.3} parent=11 // pred_fallthru
          _
        // Predicated region
        $region17: #{channel_attention_pallas.3} parent=11 // pred_check
          %p164 = pneg %p64
        $region18: #{channel_attention_pallas.3} parent=11 // pred_check_branch
          %166 = sbr.rel (%p164) target = $region20
        $region19: #{channel_attention_pallas.3} parent=11 // pred_region
          _
        $region20: #{channel_attention_pallas.3} parent=11 // pred_fallthru
          _
        // Predicated region
        $region21: #{channel_attention_pallas.3} parent=11 // pred_check
          %p167 = pneg %p90
        $region22: #{channel_attention_pallas.3} parent=11 // pred_check_branch
          %169 = sbr.rel (%p167) target = $region24
        $region23: #{channel_attention_pallas.3} parent=11 // pred_region
          %s170 = smul.u32 8, %s19
          %p171 = scmp.lt.s32.totalorder %s170, 7
          %s172 = scalar_select %p171, %s170, 7
          %s173 = smul.addr %s172, 8
          %s174 = scalar_lea.vmem %s2, %s173
          %s175 = smul.u32 8, %s19
        $region24: #{channel_attention_pallas.3} parent=11 // pred_fallthru
          _
      $region12: #{channel_attention_pallas.3} parent=5 // pred_fallthru
        _
      %p176 = scmp.lt.s32.totalorder %s10, 2
      // Predicated region
      $region25: #{channel_attention_pallas.3} parent=5 // pred_check
        %p177 = pneg %p176
      $region26: #{channel_attention_pallas.3} parent=5 // pred_check_branch
        %179 = sbr.rel (%p177) target = $region28
      $region27: #{channel_attention_pallas.3} parent=5 // pred_region
        // Predicated region
        $region29: #{channel_attention_pallas.3} parent=27 // pred_check
          %p180 = pneg %p112
        $region30: #{channel_attention_pallas.3} parent=27 // pred_check_branch
          %182 = sbr.rel (%p180) target = $region32
        $region31: #{channel_attention_pallas.3} parent=27 // pred_region
          %s183 = sand.u32 %s102, 1
          %s184 = sand.u32 %s102, 1
          %s185 = smul.addr %s184, 1024
          %s186 = scalar_lea.vmem [#allocation2], %s185
          %s187 = smul.u32 8, %s17
          %s188 = smul.u32 16, %s18
          %s189 = smul.addr %s187, 32
          %s190 = sadd.s32 %s188, %s189
          %s191 = smul.addr %s190, 8
          %s192 = scalar_lea.vmem %s3, %s191
          // Predicated region
          $region33: #{channel_attention_pallas.3} parent=31 // pred_check
            _
          $region34: #{channel_attention_pallas.3} parent=31 // pred_check_branch
            %194 = sbr.rel (0) target = $region36
          $region35: #{channel_attention_pallas.3} parent=31 // pred_region
            // Predicated region
            $region37: #{channel_attention_pallas.3} parent=35 // pred_check
              _
            $region38: #{channel_attention_pallas.3} parent=35 // pred_check_branch
              %196 = sbr.rel (0) target = $region40
            $region39: #{channel_attention_pallas.3} parent=35 // pred_region
              loop: start=0, step=1, limit=1
              $region41: #{channel_attention_pallas.3} parent=39 // loop_pre_header
                _
              $region42: #{channel_attention_pallas.3} parent=39 // loop_header
                %s198 = sphi 0, %s202
                %p199 = scmp.ge.s32.totalorder %s198, 1
                %s203 = sphi %s192, %s192
                %s204 = sphi %s186, %s186
              $region43: #{channel_attention_pallas.3} parent=39 // loop_header_branch
                %201 = sbr.rel (%p199) target = $region47
              $region44: #{channel_attention_pallas.3} parent=39 // loop_body
                %v205 = vld [vmem:[%s203] sm:$0xff]
                %206 = vst [vmem:[%s204] sm:$0xff] %v205
                %v207 = vld [vmem:[%s203 + $0x8] sm:$0xff]
                %208 = vst [vmem:[%s204 + $0x8] sm:$0xff] %v207
                %v209 = vld [vmem:[%s203 + $0x10] sm:$0xff]
                %210 = vst [vmem:[%s204 + $0x10] sm:$0xff] %v209
                %v211 = vld [vmem:[%s203 + $0x18] sm:$0xff]
                %212 = vst [vmem:[%s204 + $0x18] sm:$0xff] %v211
                %v213 = vld [vmem:[%s203 + $0x20] sm:$0xff]
                %214 = vst [vmem:[%s204 + $0x20] sm:$0xff] %v213
                %v215 = vld [vmem:[%s203 + $0x28] sm:$0xff]
                %216 = vst [vmem:[%s204 + $0x28] sm:$0xff] %v215
                %v217 = vld [vmem:[%s203 + $0x30] sm:$0xff]
                %218 = vst [vmem:[%s204 + $0x30] sm:$0xff] %v217
                %v219 = vld [vmem:[%s203 + $0x38] sm:$0xff]
                %220 = vst [vmem:[%s204 + $0x38] sm:$0xff] %v219
                %v221 = vld [vmem:[%s203 + $0x40] sm:$0xff]
                %222 = vst [vmem:[%s204 + $0x40] sm:$0xff] %v221
                %v223 = vld [vmem:[%s203 + $0x48] sm:$0xff]
                %224 = vst [vmem:[%s204 + $0x48] sm:$0xff] %v223
                %v225 = vld [vmem:[%s203 + $0x50] sm:$0xff]
                %226 = vst [vmem:[%s204 + $0x50] sm:$0xff] %v225
                %v227 = vld [vmem:[%s203 + $0x58] sm:$0xff]
                %228 = vst [vmem:[%s204 + $0x58] sm:$0xff] %v227
                %v229 = vld [vmem:[%s203 + $0x60] sm:$0xff]
                %230 = vst [vmem:[%s204 + $0x60] sm:$0xff] %v229
                %v231 = vld [vmem:[%s203 + $0x68] sm:$0xff]
                %232 = vst [vmem:[%s204 + $0x68] sm:$0xff] %v231
                %v233 = vld [vmem:[%s203 + $0x70] sm:$0xff]
                %234 = vst [vmem:[%s204 + $0x70] sm:$0xff] %v233
                %v235 = vld [vmem:[%s203 + $0x78] sm:$0xff]
                %236 = vst [vmem:[%s204 + $0x78] sm:$0xff] %v235
                %v237 = vld [vmem:[%s203 + $0x100] sm:$0xff]
                %238 = vst [vmem:[%s204 + $0x80] sm:$0xff] %v237
                %v239 = vld [vmem:[%s203 + $0x108] sm:$0xff]
                %240 = vst [vmem:[%s204 + $0x88] sm:$0xff] %v239
                %v241 = vld [vmem:[%s203 + $0x110] sm:$0xff]
                %242 = vst [vmem:[%s204 + $0x90] sm:$0xff] %v241
                %v243 = vld [vmem:[%s203 + $0x118] sm:$0xff]
                %244 = vst [vmem:[%s204 + $0x98] sm:$0xff] %v243
                %v245 = vld [vmem:[%s203 + $0x120] sm:$0xff]
                %246 = vst [vmem:[%s204 + $0xa0] sm:$0xff] %v245
                %v247 = vld [vmem:[%s203 + $0x128] sm:$0xff]
                %248 = vst [vmem:[%s204 + $0xa8] sm:$0xff] %v247
                %v249 = vld [vmem:[%s203 + $0x130] sm:$0xff]
                %250 = vst [vmem:[%s204 + $0xb0] sm:$0xff] %v249
                %v251 = vld [vmem:[%s203 + $0x138] sm:$0xff]
                %252 = vst [vmem:[%s204 + $0xb8] sm:$0xff] %v251
                %v253 = vld [vmem:[%s203 + $0x140] sm:$0xff]
                %254 = vst [vmem:[%s204 + $0xc0] sm:$0xff] %v253
                %v255 = vld [vmem:[%s203 + $0x148] sm:$0xff]
                %256 = vst [vmem:[%s204 + $0xc8] sm:$0xff] %v255
                %v257 = vld [vmem:[%s203 + $0x150] sm:$0xff]
                %258 = vst [vmem:[%s204 + $0xd0] sm:$0xff] %v257
                %v259 = vld [vmem:[%s203 + $0x158] sm:$0xff]
                %260 = vst [vmem:[%s204 + $0xd8] sm:$0xff] %v259
                %v261 = vld [vmem:[%s203 + $0x160] sm:$0xff]
                %262 = vst [vmem:[%s204 + $0xe0] sm:$0xff] %v261
                %v263 = vld [vmem:[%s203 + $0x168] sm:$0xff]
                %264 = vst [vmem:[%s204 + $0xe8] sm:$0xff] %v263
                %v265 = vld [vmem:[%s203 + $0x170] sm:$0xff]
                %266 = vst [vmem:[%s204 + $0xf0] sm:$0xff] %v265
                %v267 = vld [vmem:[%s203 + $0x178] sm:$0xff]
                %268 = vst [vmem:[%s204 + $0xf8] sm:$0xff] %v267
                %v269 = vld [vmem:[%s203 + $0x200] sm:$0xff]
                %270 = vst [vmem:[%s204 + $0x100] sm:$0xff] %v269
                %v271 = vld [vmem:[%s203 + $0x208] sm:$0xff]
                %272 = vst [vmem:[%s204 + $0x108] sm:$0xff] %v271
                %v273 = vld [vmem:[%s203 + $0x210] sm:$0xff]
                %274 = vst [vmem:[%s204 + $0x110] sm:$0xff] %v273
                %v275 = vld [vmem:[%s203 + $0x218] sm:$0xff]
                %276 = vst [vmem:[%s204 + $0x118] sm:$0xff] %v275
                %v277 = vld [vmem:[%s203 + $0x220] sm:$0xff]
                %278 = vst [vmem:[%s204 + $0x120] sm:$0xff] %v277
                %v279 = vld [vmem:[%s203 + $0x228] sm:$0xff]
                %280 = vst [vmem:[%s204 + $0x128] sm:$0xff] %v279
                %v281 = vld [vmem:[%s203 + $0x230] sm:$0xff]
                %282 = vst [vmem:[%s204 + $0x130] sm:$0xff] %v281
                %v283 = vld [vmem:[%s203 + $0x238] sm:$0xff]
                %284 = vst [vmem:[%s204 + $0x138] sm:$0xff] %v283
                %v285 = vld [vmem:[%s203 + $0x240] sm:$0xff]
                %286 = vst [vmem:[%s204 + $0x140] sm:$0xff] %v285
                %v287 = vld [vmem:[%s203 + $0x248] sm:$0xff]
                %288 = vst [vmem:[%s204 + $0x148] sm:$0xff] %v287
                %v289 = vld [vmem:[%s203 + $0x250] sm:$0xff]
                %290 = vst [vmem:[%s204 + $0x150] sm:$0xff] %v289
                %v291 = vld [vmem:[%s203 + $0x258] sm:$0xff]
                %292 = vst [vmem:[%s204 + $0x158] sm:$0xff] %v291
                %v293 = vld [vmem:[%s203 + $0x260] sm:$0xff]
                %294 = vst [vmem:[%s204 + $0x160] sm:$0xff] %v293
                %v295 = vld [vmem:[%s203 + $0x268] sm:$0xff]
                %296 = vst [vmem:[%s204 + $0x168] sm:$0xff] %v295
                %v297 = vld [vmem:[%s203 + $0x270] sm:$0xff]
                %298 = vst [vmem:[%s204 + $0x170] sm:$0xff] %v297
                %v299 = vld [vmem:[%s203 + $0x278] sm:$0xff]
                %300 = vst [vmem:[%s204 + $0x178] sm:$0xff] %v299
                %v301 = vld [vmem:[%s203 + $0x300] sm:$0xff]
                %302 = vst [vmem:[%s204 + $0x180] sm:$0xff] %v301
                %v303 = vld [vmem:[%s203 + $0x308] sm:$0xff]
                %304 = vst [vmem:[%s204 + $0x188] sm:$0xff] %v303
                %v305 = vld [vmem:[%s203 + $0x310] sm:$0xff]
                %306 = vst [vmem:[%s204 + $0x190] sm:$0xff] %v305
                %v307 = vld [vmem:[%s203 + $0x318] sm:$0xff]
                %308 = vst [vmem:[%s204 + $0x198] sm:$0xff] %v307
                %v309 = vld [vmem:[%s203 + $0x320] sm:$0xff]
                %310 = vst [vmem:[%s204 + $0x1a0] sm:$0xff] %v309
                %v311 = vld [vmem:[%s203 + $0x328] sm:$0xff]
                %312 = vst [vmem:[%s204 + $0x1a8] sm:$0xff] %v311
                %v313 = vld [vmem:[%s203 + $0x330] sm:$0xff]
                %314 = vst [vmem:[%s204 + $0x1b0] sm:$0xff] %v313
                %v315 = vld [vmem:[%s203 + $0x338] sm:$0xff]
                %316 = vst [vmem:[%s204 + $0x1b8] sm:$0xff] %v315
                %v317 = vld [vmem:[%s203 + $0x340] sm:$0xff]
                %318 = vst [vmem:[%s204 + $0x1c0] sm:$0xff] %v317
                %v319 = vld [vmem:[%s203 + $0x348] sm:$0xff]
                %320 = vst [vmem:[%s204 + $0x1c8] sm:$0xff] %v319
                %v321 = vld [vmem:[%s203 + $0x350] sm:$0xff]
                %322 = vst [vmem:[%s204 + $0x1d0] sm:$0xff] %v321
                %v323 = vld [vmem:[%s203 + $0x358] sm:$0xff]
                %324 = vst [vmem:[%s204 + $0x1d8] sm:$0xff] %v323
                %v325 = vld [vmem:[%s203 + $0x360] sm:$0xff]
                %326 = vst [vmem:[%s204 + $0x1e0] sm:$0xff] %v325
                %v327 = vld [vmem:[%s203 + $0x368] sm:$0xff]
                %328 = vst [vmem:[%s204 + $0x1e8] sm:$0xff] %v327
                %v329 = vld [vmem:[%s203 + $0x370] sm:$0xff]
                %330 = vst [vmem:[%s204 + $0x1f0] sm:$0xff] %v329
                %v331 = vld [vmem:[%s203 + $0x378] sm:$0xff]
                %332 = vst [vmem:[%s204 + $0x1f8] sm:$0xff] %v331
                %v333 = vld [vmem:[%s203 + $0x400] sm:$0xff]
                %334 = vst [vmem:[%s204 + $0x200] sm:$0xff] %v333
                %v335 = vld [vmem:[%s203 + $0x408] sm:$0xff]
                %336 = vst [vmem:[%s204 + $0x208] sm:$0xff] %v335
                %v337 = vld [vmem:[%s203 + $0x410] sm:$0xff]
                %338 = vst [vmem:[%s204 + $0x210] sm:$0xff] %v337
                %v339 = vld [vmem:[%s203 + $0x418] sm:$0xff]
                %340 = vst [vmem:[%s204 + $0x218] sm:$0xff] %v339
                %v341 = vld [vmem:[%s203 + $0x420] sm:$0xff]
                %342 = vst [vmem:[%s204 + $0x220] sm:$0xff] %v341
                %v343 = vld [vmem:[%s203 + $0x428] sm:$0xff]
                %344 = vst [vmem:[%s204 + $0x228] sm:$0xff] %v343
                %v345 = vld [vmem:[%s203 + $0x430] sm:$0xff]
                %346 = vst [vmem:[%s204 + $0x230] sm:$0xff] %v345
                %v347 = vld [vmem:[%s203 + $0x438] sm:$0xff]
                %348 = vst [vmem:[%s204 + $0x238] sm:$0xff] %v347
                %v349 = vld [vmem:[%s203 + $0x440] sm:$0xff]
                %350 = vst [vmem:[%s204 + $0x240] sm:$0xff] %v349
                %v351 = vld [vmem:[%s203 + $0x448] sm:$0xff]
                %352 = vst [vmem:[%s204 + $0x248] sm:$0xff] %v351
                %v353 = vld [vmem:[%s203 + $0x450] sm:$0xff]
                %354 = vst [vmem:[%s204 + $0x250] sm:$0xff] %v353
                %v355 = vld [vmem:[%s203 + $0x458] sm:$0xff]
                %356 = vst [vmem:[%s204 + $0x258] sm:$0xff] %v355
                %v357 = vld [vmem:[%s203 + $0x460] sm:$0xff]
                %358 = vst [vmem:[%s204 + $0x260] sm:$0xff] %v357
                %v359 = vld [vmem:[%s203 + $0x468] sm:$0xff]
                %360 = vst [vmem:[%s204 + $0x268] sm:$0xff] %v359
                %v361 = vld [vmem:[%s203 + $0x470] sm:$0xff]
                %362 = vst [vmem:[%s204 + $0x270] sm:$0xff] %v361
                %v363 = vld [vmem:[%s203 + $0x478] sm:$0xff]
                %364 = vst [vmem:[%s204 + $0x278] sm:$0xff] %v363
                %v365 = vld [vmem:[%s203 + $0x500] sm:$0xff]
                %366 = vst [vmem:[%s204 + $0x280] sm:$0xff] %v365
                %v367 = vld [vmem:[%s203 + $0x508] sm:$0xff]
                %368 = vst [vmem:[%s204 + $0x288] sm:$0xff] %v367
                %v369 = vld [vmem:[%s203 + $0x510] sm:$0xff]
                %370 = vst [vmem:[%s204 + $0x290] sm:$0xff] %v369
                %v371 = vld [vmem:[%s203 + $0x518] sm:$0xff]
                %372 = vst [vmem:[%s204 + $0x298] sm:$0xff] %v371
                %v373 = vld [vmem:[%s203 + $0x520] sm:$0xff]
                %374 = vst [vmem:[%s204 + $0x2a0] sm:$0xff] %v373
                %v375 = vld [vmem:[%s203 + $0x528] sm:$0xff]
                %376 = vst [vmem:[%s204 + $0x2a8] sm:$0xff] %v375
                %v377 = vld [vmem:[%s203 + $0x530] sm:$0xff]
                %378 = vst [vmem:[%s204 + $0x2b0] sm:$0xff] %v377
                %v379 = vld [vmem:[%s203 + $0x538] sm:$0xff]
                %380 = vst [vmem:[%s204 + $0x2b8] sm:$0xff] %v379
                %v381 = vld [vmem:[%s203 + $0x540] sm:$0xff]
                %382 = vst [vmem:[%s204 + $0x2c0] sm:$0xff] %v381
                %v383 = vld [vmem:[%s203 + $0x548] sm:$0xff]
                %384 = vst [vmem:[%s204 + $0x2c8] sm:$0xff] %v383
                %v385 = vld [vmem:[%s203 + $0x550] sm:$0xff]
                %386 = vst [vmem:[%s204 + $0x2d0] sm:$0xff] %v385
                %v387 = vld [vmem:[%s203 + $0x558] sm:$0xff]
                %388 = vst [vmem:[%s204 + $0x2d8] sm:$0xff] %v387
                %v389 = vld [vmem:[%s203 + $0x560] sm:$0xff]
                %390 = vst [vmem:[%s204 + $0x2e0] sm:$0xff] %v389
                %v391 = vld [vmem:[%s203 + $0x568] sm:$0xff]
                %392 = vst [vmem:[%s204 + $0x2e8] sm:$0xff] %v391
                %v393 = vld [vmem:[%s203 + $0x570] sm:$0xff]
                %394 = vst [vmem:[%s204 + $0x2f0] sm:$0xff] %v393
                %v395 = vld [vmem:[%s203 + $0x578] sm:$0xff]
                %396 = vst [vmem:[%s204 + $0x2f8] sm:$0xff] %v395
                %v397 = vld [vmem:[%s203 + $0x600] sm:$0xff]
                %398 = vst [vmem:[%s204 + $0x300] sm:$0xff] %v397
                %v399 = vld [vmem:[%s203 + $0x608] sm:$0xff]
                %400 = vst [vmem:[%s204 + $0x308] sm:$0xff] %v399
                %v401 = vld [vmem:[%s203 + $0x610] sm:$0xff]
                %402 = vst [vmem:[%s204 + $0x310] sm:$0xff] %v401
                %v403 = vld [vmem:[%s203 + $0x618] sm:$0xff]
                %404 = vst [vmem:[%s204 + $0x318] sm:$0xff] %v403
                %v405 = vld [vmem:[%s203 + $0x620] sm:$0xff]
                %406 = vst [vmem:[%s204 + $0x320] sm:$0xff] %v405
                %v407 = vld [vmem:[%s203 + $0x628] sm:$0xff]
                %408 = vst [vmem:[%s204 + $0x328] sm:$0xff] %v407
                %v409 = vld [vmem:[%s203 + $0x630] sm:$0xff]
                %410 = vst [vmem:[%s204 + $0x330] sm:$0xff] %v409
                %v411 = vld [vmem:[%s203 + $0x638] sm:$0xff]
                %412 = vst [vmem:[%s204 + $0x338] sm:$0xff] %v411
                %v413 = vld [vmem:[%s203 + $0x640] sm:$0xff]
                %414 = vst [vmem:[%s204 + $0x340] sm:$0xff] %v413
                %v415 = vld [vmem:[%s203 + $0x648] sm:$0xff]
                %416 = vst [vmem:[%s204 + $0x348] sm:$0xff] %v415
                %v417 = vld [vmem:[%s203 + $0x650] sm:$0xff]
                %418 = vst [vmem:[%s204 + $0x350] sm:$0xff] %v417
                %v419 = vld [vmem:[%s203 + $0x658] sm:$0xff]
                %420 = vst [vmem:[%s204 + $0x358] sm:$0xff] %v419
                %v421 = vld [vmem:[%s203 + $0x660] sm:$0xff]
                %422 = vst [vmem:[%s204 + $0x360] sm:$0xff] %v421
                %v423 = vld [vmem:[%s203 + $0x668] sm:$0xff]
                %424 = vst [vmem:[%s204 + $0x368] sm:$0xff] %v423
                %v425 = vld [vmem:[%s203 + $0x670] sm:$0xff]
                %426 = vst [vmem:[%s204 + $0x370] sm:$0xff] %v425
                %v427 = vld [vmem:[%s203 + $0x678] sm:$0xff]
                %428 = vst [vmem:[%s204 + $0x378] sm:$0xff] %v427
                %v429 = vld [vmem:[%s203 + $0x700] sm:$0xff]
                %430 = vst [vmem:[%s204 + $0x380] sm:$0xff] %v429
                %v431 = vld [vmem:[%s203 + $0x708] sm:$0xff]
                %432 = vst [vmem:[%s204 + $0x388] sm:$0xff] %v431
                %v433 = vld [vmem:[%s203 + $0x710] sm:$0xff]
                %434 = vst [vmem:[%s204 + $0x390] sm:$0xff] %v433
                %v435 = vld [vmem:[%s203 + $0x718] sm:$0xff]
                %436 = vst [vmem:[%s204 + $0x398] sm:$0xff] %v435
                %v437 = vld [vmem:[%s203 + $0x720] sm:$0xff]
                %438 = vst [vmem:[%s204 + $0x3a0] sm:$0xff] %v437
                %v439 = vld [vmem:[%s203 + $0x728] sm:$0xff]
                %440 = vst [vmem:[%s204 + $0x3a8] sm:$0xff] %v439
                %v441 = vld [vmem:[%s203 + $0x730] sm:$0xff]
                %442 = vst [vmem:[%s204 + $0x3b0] sm:$0xff] %v441
                %v443 = vld [vmem:[%s203 + $0x738] sm:$0xff]
                %444 = vst [vmem:[%s204 + $0x3b8] sm:$0xff] %v443
                %v445 = vld [vmem:[%s203 + $0x740] sm:$0xff]
                %446 = vst [vmem:[%s204 + $0x3c0] sm:$0xff] %v445
                %v447 = vld [vmem:[%s203 + $0x748] sm:$0xff]
                %448 = vst [vmem:[%s204 + $0x3c8] sm:$0xff] %v447
                %v449 = vld [vmem:[%s203 + $0x750] sm:$0xff]
                %450 = vst [vmem:[%s204 + $0x3d0] sm:$0xff] %v449
                %v451 = vld [vmem:[%s203 + $0x758] sm:$0xff]
                %452 = vst [vmem:[%s204 + $0x3d8] sm:$0xff] %v451
                %v453 = vld [vmem:[%s203 + $0x760] sm:$0xff]
                %454 = vst [vmem:[%s204 + $0x3e0] sm:$0xff] %v453
                %v455 = vld [vmem:[%s203 + $0x768] sm:$0xff]
                %456 = vst [vmem:[%s204 + $0x3e8] sm:$0xff] %v455
                %v457 = vld [vmem:[%s203 + $0x770] sm:$0xff]
                %458 = vst [vmem:[%s204 + $0x3f0] sm:$0xff] %v457
                %v459 = vld [vmem:[%s203 + $0x778] sm:$0xff]
                %460 = vst [vmem:[%s204 + $0x3f8] sm:$0xff] %v459
              $region45: #{channel_attention_pallas.3} parent=39 // loop_footer
                %s202 = sadd.s32 1, %s198
              $region46: #{channel_attention_pallas.3} parent=39 // loop_footer_branch
                %197 = sbr.rel target = $region42
              $region47: #{channel_attention_pallas.3} parent=39 // loop_exit
                _
            $region40: #{channel_attention_pallas.3} parent=35 // pred_fallthru
              _
            // Predicated region
            $region48: #{channel_attention_pallas.3} parent=35 // pred_check
              _
            $region49: #{channel_attention_pallas.3} parent=35 // pred_check_branch
              %462 = sbr.rel target = $region51
            $region50: #{channel_attention_pallas.3} parent=35 // pred_region
              _
            $region51: #{channel_attention_pallas.3} parent=35 // pred_fallthru
              _
          $region36: #{channel_attention_pallas.3} parent=31 // pred_fallthru
            _
          %463 = vnop
        $region32: #{channel_attention_pallas.3} parent=27 // pred_fallthru
          _
      $region28: #{channel_attention_pallas.3} parent=5 // pred_fallthru
        _
      %p464 = scmp.le.s32.totalorder 1, %s10
      %p465 = scmp.lt.s32.totalorder %s10, 3
      %p466 = pnand %p464, %p465
      %p467 = pneg %p466
      // Predicated region
      $region52: #{channel_attention_pallas.3} parent=5 // pred_check
        _
      $region53: #{channel_attention_pallas.3} parent=5 // pred_check_branch
        %469 = sbr.rel (%p466) target = $region55
      $region54: #{channel_attention_pallas.3} parent=5 // pred_region
        %s470 = ssub.s32 %s10, 1
        %s471 = sand.u32 %s105, 1
        %s472 = sand.u32 %s105, 1
        %s473 = smul.addr %s472, 1024
        %s474 = scalar_lea.vmem [#allocation2], %s473
        // Predicated region
        $region56: #{channel_attention_pallas.3} parent=54 // pred_check
          %p475 = pneg %p118
        $region57: #{channel_attention_pallas.3} parent=54 // pred_check_branch
          %477 = sbr.rel (%p475) target = $region59
        $region58: #{channel_attention_pallas.3} parent=54 // pred_region
          _
        $region59: #{channel_attention_pallas.3} parent=54 // pred_fallthru
          _
        %p478 = pneg %p43
        %p479 = pneg %p40
        %p480 = pneg %p64
        %p481 = pneg %p61
        %s482 = smul.u32 8, %s19
        %p483 = scmp.lt.s32.totalorder %s482, 7
        %s484 = scalar_select %p483, %s482, 7
        %s485 = smul.addr %s484, 8
        %s486 = scalar_lea.vmem %s2, %s485
        %p487 = pneg %p90
        %p488 = pneg %p87
        %s489 = sand.u32 %s105, 1
        %s490 = sand.u32 %s105, 1
        %s491 = smul.addr %s490, 1024
        %s492 = scalar_lea.vmem [#allocation2], %s491
        %p493 = pneg %p118
        %p494 = pneg %p115
        %p495 = pneg %p146
        %p496 = pneg %p143
        %s497 = sand.u32 %s133, 1
        %s498 = sand.u32 %s133, 1
        %s499 = smul.addr %s498, 1024
        %s500 = scalar_lea.vmem [#allocation3], %s499
        %s501 = smul.u32 8, %s19
        %p502 = scmp.lt.s32.totalorder %s501, 7
        %s503 = scalar_select %p502, %s501, 7
        %s504 = smul.addr %s503, 8
        %s505 = scalar_lea.vmem %s2, %s504
        %s506 = smul.u32 8, %s19
        %s507 = smul.u32 8, %s19
        %s508 = smul.u32 16, %s20
        %s509 = smul.u32 8, %s19
        %s510 = smul.u32 16, %s20
        %v511 = vld [vmem:[%s0] sm:$0xff]
        %v512 = vld [vmem:[%s0 + $0x8] sm:$0xff]
        %v513 = vld [vmem:[%s0 + $0x10] sm:$0xff]
        %v514 = vld [vmem:[%s0 + $0x18] sm:$0xff]
        %v515 = vld [vmem:[%s0 + $0x20] sm:$0xff]
        %v516 = vld [vmem:[%s0 + $0x28] sm:$0xff]
        %v517 = vld [vmem:[%s0 + $0x30] sm:$0xff]
        %v518 = vld [vmem:[%s0 + $0x38] sm:$0xff]
        %v519 = vld [vmem:[%s0 + $0x40] sm:$0xff]
        %v520 = vld [vmem:[%s0 + $0x48] sm:$0xff]
        %v521 = vld [vmem:[%s0 + $0x50] sm:$0xff]
        %v522 = vld [vmem:[%s0 + $0x58] sm:$0xff]
        %v523 = vld [vmem:[%s0 + $0x60] sm:$0xff]
        %v524 = vld [vmem:[%s0 + $0x68] sm:$0xff]
        %v525 = vld [vmem:[%s0 + $0x70] sm:$0xff]
        %v526 = vld [vmem:[%s0 + $0x78] sm:$0xff]
        %vm527 = vcmask 7168
        %v528 = vsel %vm527, %v511, 0.0
        %v529 = vsel %vm527, %v519, 0.0
        %v530 = vadd.f32 %v528, %v529
        %v531 = vsel %vm527, %v512, 0.0
        %v532 = vsel %vm527, %v520, 0.0
        %v533 = vadd.f32 %v531, %v532
        %v534 = vsel %vm527, %v513, 0.0
        %v535 = vsel %vm527, %v521, 0.0
        %v536 = vadd.f32 %v534, %v535
        %v537 = vsel %vm527, %v514, 0.0
        %v538 = vsel %vm527, %v522, 0.0
        %v539 = vadd.f32 %v537, %v538
        %v540 = vsel %vm527, %v515, 0.0
        %v541 = vsel %vm527, %v523, 0.0
        %v542 = vadd.f32 %v540, %v541
        %v543 = vsel %vm527, %v516, 0.0
        %v544 = vsel %vm527, %v524, 0.0
        %v545 = vadd.f32 %v543, %v544
        %v546 = vsel %vm527, %v517, 0.0
        %v547 = vsel %vm527, %v525, 0.0
        %v548 = vadd.f32 %v546, %v547
        %v549 = vsel %vm527, %v518, 0.0
        %v550 = vsel %vm527, %v526, 0.0
        %v551 = vadd.f32 %v549, %v550
        %v552 = vmul.f32 %v530, 0.00024414063
        %v553 = vmul.f32 %v533, 0.00024414063
        %v554 = vmul.f32 %v536, 0.00024414063
        %v555 = vmul.f32 %v539, 0.00024414063
        %v556 = vmul.f32 %v542, 0.00024414063
        %v557 = vmul.f32 %v545, 0.00024414063
        %v558 = vmul.f32 %v548, 0.00024414063
        %v559 = vmul.f32 %v551, 0.00024414063
        %v560 = vld [vmem:[%s1] sm:$0xf]
        %vm561 = vcmask 523264
        %v563 = vsel %vm561, %v560, 0
        %565 = vmatprep.subr.mxu0 0.0
        %566 = vmatpush1.msra.mxu0 %v552
        %567 = vmatprep.subr.mxu0 0.0
        %568 = vmatpush1.msra.mxu0 %v553
        %569 = vmatprep.subr.mxu0 0.0
        %570 = vmatpush1.msra.mxu0 %v554
        %571 = vmatprep.subr.mxu0 0.0
        %572 = vmatpush1.msra.mxu0 %v555
        %573 = vmatprep.subr.mxu0 0.0
        %574 = vmatpush1.msra.mxu0 %v556
        %575 = vmatprep.subr.mxu0 0.0
        %576 = vmatpush1.msra.mxu0 %v557
        %577 = vmatprep.subr.mxu0 0.0
        %578 = vmatpush1.msra.mxu0 %v558
        %579 = vmatprep.subr.mxu0 0.0
        %580 = vmatpush1.msra.mxu0 %v559
        %581 = vmatprep.subr.mxu0 0.0
        %582 = vmatpush1.msra.mxu0 0.0
        %583 = vmatprep.subr.mxu0 0.0
        %584 = vmatpush1.msra.mxu0 0.0
        %585 = vmatprep.subr.mxu0 0.0
        %586 = vmatpush1.msra.mxu0 0.0
        %587 = vmatprep.subr.mxu0 0.0
        %588 = vmatpush1.msra.mxu0 0.0
        %589 = vmatprep.subr.mxu0 0.0
        %590 = vmatpush1.msra.mxu0 0.0
        %591 = vmatprep.subr.mxu0 0.0
        %592 = vmatpush1.msra.mxu0 0.0
        %593 = vmatprep.subr.mxu0 0.0
        %594 = vmatpush1.msra.mxu0 0.0
        %595 = vmatprep.subr.mxu0 0.0
        %596 = vmatpush1.msra.mxu0 0.0
        %597 = vmatprep.subr.mxu0 0.0
        %598 = vmatpush1.msra.mxu0 0.0
        %599 = vmatprep.subr.mxu0 0.0
        %600 = vmatpush1.msra.mxu0 0.0
        %601 = vmatprep.subr.mxu0 0.0
        %602 = vmatpush1.msra.mxu0 0.0
        %603 = vmatprep.subr.mxu0 0.0
        %604 = vmatpush1.msra.mxu0 0.0
        %605 = vmatprep.subr.mxu0 0.0
        %606 = vmatpush1.msra.mxu0 0.0
        %607 = vmatprep.subr.mxu0 0.0
        %608 = vmatpush1.msra.mxu0 0.0
        %609 = vmatprep.subr.mxu0 0.0
        %610 = vmatpush1.msra.mxu0 0.0
        %611 = vmatprep.subr.mxu0 0.0
        %612 = vmatpush1.msra.mxu0 0.0
        %613 = vmatprep.subr.mxu0 0.0
        %614 = vmatpush1.msra.mxu0 0.0
        %615 = vmatprep.subr.mxu0 0.0
        %616 = vmatpush1.msra.mxu0 0.0
        %617 = vmatprep.subr.mxu0 0.0
        %618 = vmatpush1.msra.mxu0 0.0
        %619 = vmatprep.subr.mxu0 0.0
        %620 = vmatpush1.msra.mxu0 0.0
        %621 = vmatprep.subr.mxu0 0.0
        %622 = vmatpush1.msra.mxu0 0.0
        %623 = vmatprep.subr.mxu0 0.0
        %624 = vmatpush1.msra.mxu0 0.0
        %625 = vmatprep.subr.mxu0 0.0
        %626 = vmatpush1.msra.mxu0 0.0
        %627 = vmatprep.subr.mxu0 0.0
        %628 = vmatpush1.msra.mxu0 0.0
        %629 = vmatprep.mubr.f32.mxu0 0.0
        %630 = vmatmul.mubr.f32.gmra.mrb[0].mxu0 %v563
        %v631 = vpop.f32.mrb[0].mxu0
        %v632 = vadd.f32 0.0, %v631
        %v633 = vpop.f32.mrb[0].mxu0
        %634 = vdwg.mxu0
        %v635 = vmax.f32 %v632, 0.0
        %v636 = vld [vmem:[%s505] sm:$0xff]
        %v637 = vld [vmem:[%s505 + $0x8] sm:$0xff]
        %v638 = vld [vmem:[%s505 + $0x10] sm:$0xff]
        %v639 = vld [vmem:[%s505 + $0x18] sm:$0xff]
        %v640 = vld [vmem:[%s505 + $0x20] sm:$0xff]
        %v641 = vld [vmem:[%s505 + $0x28] sm:$0xff]
        %v642 = vld [vmem:[%s505 + $0x30] sm:$0xff]
        %v643 = vld [vmem:[%s505 + $0x38] sm:$0xff]
        %vm644 = vcmask 31744
        %v646 = vsel %vm644, %v636, 0
        %v649 = vsel %vm644, %v637, 0
        %v652 = vsel %vm644, %v638, 0
        %v655 = vsel %vm644, %v639, 0
        %v658 = vsel %vm644, %v640, 0
        %v661 = vsel %vm644, %v641, 0
        %v664 = vsel %vm644, %v642, 0
        %v667 = vsel %vm644, %v643, 0
        %vm669 = vcmask 1043456
        %v671 = vsel %vm669, %v635, 0
        %673 = vmatprep.subr.mxu0 0.0
        %674 = vmatpush1.msra.mxu0 %v671
        %675 = vmatprep.subr.mxu0 0.0
        %676 = vmatpush1.msra.mxu0 0.0
        %677 = vmatprep.subr.mxu0 0.0
        %678 = vmatpush1.msra.mxu0 0.0
        %679 = vmatprep.subr.mxu0 0.0
        %680 = vmatpush1.msra.mxu0 0.0
        %681 = vmatprep.subr.mxu0 0.0
        %682 = vmatpush1.msra.mxu0 0.0
        %683 = vmatprep.subr.mxu0 0.0
        %684 = vmatpush1.msra.mxu0 0.0
        %685 = vmatprep.subr.mxu0 0.0
        %686 = vmatpush1.msra.mxu0 0.0
        %687 = vmatprep.subr.mxu0 0.0
        %688 = vmatpush1.msra.mxu0 0.0
        %689 = vmatprep.subr.mxu0 0.0
        %690 = vmatpush1.msra.mxu0 0.0
        %691 = vmatprep.subr.mxu0 0.0
        %692 = vmatpush1.msra.mxu0 0.0
        %693 = vmatprep.subr.mxu0 0.0
        %694 = vmatpush1.msra.mxu0 0.0
        %695 = vmatprep.subr.mxu0 0.0
        %696 = vmatpush1.msra.mxu0 0.0
        %697 = vmatprep.subr.mxu0 0.0
        %698 = vmatpush1.msra.mxu0 0.0
        %699 = vmatprep.subr.mxu0 0.0
        %700 = vmatpush1.msra.mxu0 0.0
        %701 = vmatprep.subr.mxu0 0.0
        %702 = vmatpush1.msra.mxu0 0.0
        %703 = vmatprep.subr.mxu0 0.0
        %704 = vmatpush1.msra.mxu0 0.0
        %705 = vmatprep.subr.mxu0 0.0
        %706 = vmatpush1.msra.mxu0 0.0
        %707 = vmatprep.subr.mxu0 0.0
        %708 = vmatpush1.msra.mxu0 0.0
        %709 = vmatprep.subr.mxu0 0.0
        %710 = vmatpush1.msra.mxu0 0.0
        %711 = vmatprep.subr.mxu0 0.0
        %712 = vmatpush1.msra.mxu0 0.0
        %713 = vmatprep.subr.mxu0 0.0
        %714 = vmatpush1.msra.mxu0 0.0
        %715 = vmatprep.subr.mxu0 0.0
        %716 = vmatpush1.msra.mxu0 0.0
        %717 = vmatprep.subr.mxu0 0.0
        %718 = vmatpush1.msra.mxu0 0.0
        %719 = vmatprep.subr.mxu0 0.0
        %720 = vmatpush1.msra.mxu0 0.0
        %721 = vmatprep.subr.mxu0 0.0
        %722 = vmatpush1.msra.mxu0 0.0
        %723 = vmatprep.subr.mxu0 0.0
        %724 = vmatpush1.msra.mxu0 0.0
        %725 = vmatprep.subr.mxu0 0.0
        %726 = vmatpush1.msra.mxu0 0.0
        %727 = vmatprep.subr.mxu0 0.0
        %728 = vmatpush1.msra.mxu0 0.0
        %729 = vmatprep.subr.mxu0 0.0
        %730 = vmatpush1.msra.mxu0 0.0
        %731 = vmatprep.subr.mxu0 0.0
        %732 = vmatpush1.msra.mxu0 0.0
        %733 = vmatprep.subr.mxu0 0.0
        %734 = vmatpush1.msra.mxu0 0.0
        %735 = vmatprep.subr.mxu0 0.0
        %736 = vmatpush1.msra.mxu0 0.0
        %737 = vmatprep.mubr.f32.mxu0 0.0
        %738 = vmatmul.mubr.f32.gmra.mrb[0].mxu0 %v646
        %v739 = vpop.f32.mrb[0].mxu0
        %v740 = vadd.f32 0.0, %v739
        %v741 = vpop.f32.mrb[0].mxu0
        %742 = vmatprep.mubr.f32.mxu0 0.0
        %743 = vmatmul.mubr.f32.gmra.mrb[0].mxu0 %v649
        %v744 = vpop.f32.mrb[0].mxu0
        %v745 = vadd.f32 0.0, %v744
        %v746 = vpop.f32.mrb[0].mxu0
        %747 = vmatprep.mubr.f32.mxu0 0.0
        %748 = vmatmul.mubr.f32.gmra.mrb[0].mxu0 %v652
        %v749 = vpop.f32.mrb[0].mxu0
        %v750 = vadd.f32 0.0, %v749
        %v751 = vpop.f32.mrb[0].mxu0
        %752 = vmatprep.mubr.f32.mxu0 0.0
        %753 = vmatmul.mubr.f32.gmra.mrb[0].mxu0 %v655
        %v754 = vpop.f32.mrb[0].mxu0
        %v755 = vadd.f32 0.0, %v754
        %v756 = vpop.f32.mrb[0].mxu0
        %757 = vmatprep.mubr.f32.mxu0 0.0
        %758 = vmatmul.mubr.f32.gmra.mrb[0].mxu0 %v658
        %v759 = vpop.f32.mrb[0].mxu0
        %v760 = vadd.f32 0.0, %v759
        %v761 = vpop.f32.mrb[0].mxu0
        %762 = vmatprep.mubr.f32.mxu0 0.0
        %763 = vmatmul.mubr.f32.gmra.mrb[0].mxu0 %v661
        %v764 = vpop.f32.mrb[0].mxu0
        %v765 = vadd.f32 0.0, %v764
        %v766 = vpop.f32.mrb[0].mxu0
        %767 = vmatprep.mubr.f32.mxu0 0.0
        %768 = vmatmul.mubr.f32.gmra.mrb[0].mxu0 %v664
        %v769 = vpop.f32.mrb[0].mxu0
        %v770 = vadd.f32 0.0, %v769
        %v771 = vpop.f32.mrb[0].mxu0
        %772 = vmatprep.mubr.f32.mxu0 0.0
        %773 = vmatmul.mubr.f32.gmra.mrb[0].mxu0 %v667
        %v774 = vpop.f32.mrb[0].mxu0
        %v775 = vadd.f32 0.0, %v774
        %v776 = vpop.f32.mrb[0].mxu0
        %777 = vdwg.mxu0
        %v778 = vxor.u32 %v740, 2147483648
        %v779 = vxor.u32 %v745, 2147483648
        %v780 = vxor.u32 %v750, 2147483648
        %v781 = vxor.u32 %v755, 2147483648
        %v782 = vxor.u32 %v760, 2147483648
        %v783 = vxor.u32 %v765, 2147483648
        %v784 = vxor.u32 %v770, 2147483648
        %v785 = vxor.u32 %v775, 2147483648
        %v786 = vmul.f32 %v778, 1.442695
        %v787 = vpow.pop %v786
        %v788 = vmul.f32 %v779, 1.442695
        %v789 = vpow.pop %v788
        %v790 = vmul.f32 %v780, 1.442695
        %v791 = vpow.pop %v790
        %v792 = vmul.f32 %v781, 1.442695
        %v793 = vpow.pop %v792
        %v794 = vmul.f32 %v782, 1.442695
        %v795 = vpow.pop %v794
        %v796 = vmul.f32 %v783, 1.442695
        %v797 = vpow.pop %v796
        %v798 = vmul.f32 %v784, 1.442695
        %v799 = vpow.pop %v798
        %v800 = vmul.f32 %v785, 1.442695
        %v801 = vpow.pop %v800
        %v802 = vadd.f32 %v787, 1.0
        %v803 = vadd.f32 %v789, 1.0
        %v804 = vadd.f32 %v791, 1.0
        %v805 = vadd.f32 %v793, 1.0
        %v806 = vadd.f32 %v795, 1.0
        %v807 = vadd.f32 %v797, 1.0
        %v808 = vadd.f32 %v799, 1.0
        %v809 = vadd.f32 %v801, 1.0
        %v810 = vrcp.pop %v802
        %v811 = vmul.f32 1.0, %v810
        %v812 = vrcp.pop %v803
        %v813 = vmul.f32 1.0, %v812
        %v814 = vrcp.pop %v804
        %v815 = vmul.f32 1.0, %v814
        %v816 = vrcp.pop %v805
        %v817 = vmul.f32 1.0, %v816
        %v818 = vrcp.pop %v806
        %v819 = vmul.f32 1.0, %v818
        %v820 = vrcp.pop %v807
        %v821 = vmul.f32 1.0, %v820
        %v822 = vrcp.pop %v808
        %v823 = vmul.f32 1.0, %v822
        %v824 = vrcp.pop %v809
        %v825 = vmul.f32 1.0, %v824
        %v826 = vld [vmem:[%s474] sm:$0xff]
        %v827 = vld [vmem:[%s474 + $0x8] sm:$0xff]
        %v828 = vld [vmem:[%s474 + $0x10] sm:$0xff]
        %v829 = vld [vmem:[%s474 + $0x18] sm:$0xff]
        %v830 = vld [vmem:[%s474 + $0x20] sm:$0xff]
        %v831 = vld [vmem:[%s474 + $0x28] sm:$0xff]
        %v832 = vld [vmem:[%s474 + $0x30] sm:$0xff]
        %v833 = vld [vmem:[%s474 + $0x38] sm:$0xff]
        %v834 = vld [vmem:[%s474 + $0x40] sm:$0xff]
        %v835 = vld [vmem:[%s474 + $0x48] sm:$0xff]
        %v836 = vld [vmem:[%s474 + $0x50] sm:$0xff]
        %v837 = vld [vmem:[%s474 + $0x58] sm:$0xff]
        %v838 = vld [vmem:[%s474 + $0x60] sm:$0xff]
        %v839 = vld [vmem:[%s474 + $0x68] sm:$0xff]
        %v840 = vld [vmem:[%s474 + $0x70] sm:$0xff]
        %v841 = vld [vmem:[%s474 + $0x78] sm:$0xff]
        %v842 = vld [vmem:[%s474 + $0x80] sm:$0xff]
        %v843 = vld [vmem:[%s474 + $0x88] sm:$0xff]
        %v844 = vld [vmem:[%s474 + $0x90] sm:$0xff]
        %v845 = vld [vmem:[%s474 + $0x98] sm:$0xff]
        %v846 = vld [vmem:[%s474 + $0xa0] sm:$0xff]
        %v847 = vld [vmem:[%s474 + $0xa8] sm:$0xff]
        %v848 = vld [vmem:[%s474 + $0xb0] sm:$0xff]
        %v849 = vld [vmem:[%s474 + $0xb8] sm:$0xff]
        %v850 = vld [vmem:[%s474 + $0xc0] sm:$0xff]
        %v851 = vld [vmem:[%s474 + $0xc8] sm:$0xff]
        %v852 = vld [vmem:[%s474 + $0xd0] sm:$0xff]
        %v853 = vld [vmem:[%s474 + $0xd8] sm:$0xff]
        %v854 = vld [vmem:[%s474 + $0xe0] sm:$0xff]
        %v855 = vld [vmem:[%s474 + $0xe8] sm:$0xff]
        %v856 = vld [vmem:[%s474 + $0xf0] sm:$0xff]
        %v857 = vld [vmem:[%s474 + $0xf8] sm:$0xff]
        %v858 = vld [vmem:[%s474 + $0x100] sm:$0xff]
        %v859 = vld [vmem:[%s474 + $0x108] sm:$0xff]
        %v860 = vld [vmem:[%s474 + $0x110] sm:$0xff]
        %v861 = vld [vmem:[%s474 + $0x118] sm:$0xff]
        %v862 = vld [vmem:[%s474 + $0x120] sm:$0xff]
        %v863 = vld [vmem:[%s474 + $0x128] sm:$0xff]
        %v864 = vld [vmem:[%s474 + $0x130] sm:$0xff]
        %v865 = vld [vmem:[%s474 + $0x138] sm:$0xff]
        %v866 = vld [vmem:[%s474 + $0x140] sm:$0xff]
        %v867 = vld [vmem:[%s474 + $0x148] sm:$0xff]
        %v868 = vld [vmem:[%s474 + $0x150] sm:$0xff]
        %v869 = vld [vmem:[%s474 + $0x158] sm:$0xff]
        %v870 = vld [vmem:[%s474 + $0x160] sm:$0xff]
        %v871 = vld [vmem:[%s474 + $0x168] sm:$0xff]
        %v872 = vld [vmem:[%s474 + $0x170] sm:$0xff]
        %v873 = vld [vmem:[%s474 + $0x178] sm:$0xff]
        %v874 = vld [vmem:[%s474 + $0x180] sm:$0xff]
        %v875 = vld [vmem:[%s474 + $0x188] sm:$0xff]
        %v876 = vld [vmem:[%s474 + $0x190] sm:$0xff]
        %v877 = vld [vmem:[%s474 + $0x198] sm:$0xff]
        %v878 = vld [vmem:[%s474 + $0x1a0] sm:$0xff]
        %v879 = vld [vmem:[%s474 + $0x1a8] sm:$0xff]
        %v880 = vld [vmem:[%s474 + $0x1b0] sm:$0xff]
        %v881 = vld [vmem:[%s474 + $0x1b8] sm:$0xff]
        %v882 = vld [vmem:[%s474 + $0x1c0] sm:$0xff]
        %v883 = vld [vmem:[%s474 + $0x1c8] sm:$0xff]
        %v884 = vld [vmem:[%s474 + $0x1d0] sm:$0xff]
        %v885 = vld [vmem:[%s474 + $0x1d8] sm:$0xff]
        %v886 = vld [vmem:[%s474 + $0x1e0] sm:$0xff]
        %v887 = vld [vmem:[%s474 + $0x1e8] sm:$0xff]
        %v888 = vld [vmem:[%s474 + $0x1f0] sm:$0xff]
        %v889 = vld [vmem:[%s474 + $0x1f8] sm:$0xff]
        %v890 = vld [vmem:[%s474 + $0x200] sm:$0xff]
        %v891 = vld [vmem:[%s474 + $0x208] sm:$0xff]
        %v892 = vld [vmem:[%s474 + $0x210] sm:$0xff]
        %v893 = vld [vmem:[%s474 + $0x218] sm:$0xff]
        %v894 = vld [vmem:[%s474 + $0x220] sm:$0xff]
        %v895 = vld [vmem:[%s474 + $0x228] sm:$0xff]
        %v896 = vld [vmem:[%s474 + $0x230] sm:$0xff]
        %v897 = vld [vmem:[%s474 + $0x238] sm:$0xff]
        %v898 = vld [vmem:[%s474 + $0x240] sm:$0xff]
        %v899 = vld [vmem:[%s474 + $0x248] sm:$0xff]
        %v900 = vld [vmem:[%s474 + $0x250] sm:$0xff]
        %v901 = vld [vmem:[%s474 + $0x258] sm:$0xff]
        %v902 = vld [vmem:[%s474 + $0x260] sm:$0xff]
        %v903 = vld [vmem:[%s474 + $0x268] sm:$0xff]
        %v904 = vld [vmem:[%s474 + $0x270] sm:$0xff]
        %v905 = vld [vmem:[%s474 + $0x278] sm:$0xff]
        %v906 = vld [vmem:[%s474 + $0x280] sm:$0xff]
        %v907 = vld [vmem:[%s474 + $0x288] sm:$0xff]
        %v908 = vld [vmem:[%s474 + $0x290] sm:$0xff]
        %v909 = vld [vmem:[%s474 + $0x298] sm:$0xff]
        %v910 = vld [vmem:[%s474 + $0x2a0] sm:$0xff]
        %v911 = vld [vmem:[%s474 + $0x2a8] sm:$0xff]
        %v912 = vld [vmem:[%s474 + $0x2b0] sm:$0xff]
        %v913 = vld [vmem:[%s474 + $0x2b8] sm:$0xff]
        %v914 = vld [vmem:[%s474 + $0x2c0] sm:$0xff]
        %v915 = vld [vmem:[%s474 + $0x2c8] sm:$0xff]
        %v916 = vld [vmem:[%s474 + $0x2d0] sm:$0xff]
        %v917 = vld [vmem:[%s474 + $0x2d8] sm:$0xff]
        %v918 = vld [vmem:[%s474 + $0x2e0] sm:$0xff]
        %v919 = vld [vmem:[%s474 + $0x2e8] sm:$0xff]
        %v920 = vld [vmem:[%s474 + $0x2f0] sm:$0xff]
        %v921 = vld [vmem:[%s474 + $0x2f8] sm:$0xff]
        %v922 = vld [vmem:[%s474 + $0x300] sm:$0xff]
        %v923 = vld [vmem:[%s474 + $0x308] sm:$0xff]
        %v924 = vld [vmem:[%s474 + $0x310] sm:$0xff]
        %v925 = vld [vmem:[%s474 + $0x318] sm:$0xff]
        %v926 = vld [vmem:[%s474 + $0x320] sm:$0xff]
        %v927 = vld [vmem:[%s474 + $0x328] sm:$0xff]
        %v928 = vld [vmem:[%s474 + $0x330] sm:$0xff]
        %v929 = vld [vmem:[%s474 + $0x338] sm:$0xff]
        %v930 = vld [vmem:[%s474 + $0x340] sm:$0xff]
        %v931 = vld [vmem:[%s474 + $0x348] sm:$0xff]
        %v932 = vld [vmem:[%s474 + $0x350] sm:$0xff]
        %v933 = vld [vmem:[%s474 + $0x358] sm:$0xff]
        %v934 = vld [vmem:[%s474 + $0x360] sm:$0xff]
        %v935 = vld [vmem:[%s474 + $0x368] sm:$0xff]
        %v936 = vld [vmem:[%s474 + $0x370] sm:$0xff]
        %v937 = vld [vmem:[%s474 + $0x378] sm:$0xff]
        %v938 = vld [vmem:[%s474 + $0x380] sm:$0xff]
        %v939 = vld [vmem:[%s474 + $0x388] sm:$0xff]
        %v940 = vld [vmem:[%s474 + $0x390] sm:$0xff]
        %v941 = vld [vmem:[%s474 + $0x398] sm:$0xff]
        %v942 = vld [vmem:[%s474 + $0x3a0] sm:$0xff]
        %v943 = vld [vmem:[%s474 + $0x3a8] sm:$0xff]
        %v944 = vld [vmem:[%s474 + $0x3b0] sm:$0xff]
        %v945 = vld [vmem:[%s474 + $0x3b8] sm:$0xff]
        %v946 = vld [vmem:[%s474 + $0x3c0] sm:$0xff]
        %v947 = vld [vmem:[%s474 + $0x3c8] sm:$0xff]
        %v948 = vld [vmem:[%s474 + $0x3d0] sm:$0xff]
        %v949 = vld [vmem:[%s474 + $0x3d8] sm:$0xff]
        %v950 = vld [vmem:[%s474 + $0x3e0] sm:$0xff]
        %v951 = vld [vmem:[%s474 + $0x3e8] sm:$0xff]
        %v952 = vld [vmem:[%s474 + $0x3f0] sm:$0xff]
        %v953 = vld [vmem:[%s474 + $0x3f8] sm:$0xff]
        %955 = vset.pattern.permute.xlu0 0
        %956 = vperm.xlu0 %955, %v811
        %v957 = vpop.permute.xlu0 %956
        %960 = vset.pattern.permute.xlu0 0
        %961 = vperm.xlu0 %960, %v813
        %v962 = vpop.permute.xlu0 %961
        %965 = vset.pattern.permute.xlu0 0
        %966 = vperm.xlu0 %965, %v815
        %v967 = vpop.permute.xlu0 %966
        %970 = vset.pattern.permute.xlu0 0
        %971 = vperm.xlu0 %970, %v817
        %v972 = vpop.permute.xlu0 %971
        %975 = vset.pattern.permute.xlu0 0
        %976 = vperm.xlu0 %975, %v819
        %v977 = vpop.permute.xlu0 %976
        %980 = vset.pattern.permute.xlu0 0
        %981 = vperm.xlu0 %980, %v821
        %v982 = vpop.permute.xlu0 %981
        %985 = vset.pattern.permute.xlu0 0
        %986 = vperm.xlu0 %985, %v823
        %v987 = vpop.permute.xlu0 %986
        %990 = vset.pattern.permute.xlu0 0
        %991 = vperm.xlu0 %990, %v825
        %v992 = vpop.permute.xlu0 %991
        %v994 = vmul.f32 %v826, %v957
        %v995 = vmul.f32 %v827, %v957
        %v996 = vmul.f32 %v828, %v957
        %v997 = vmul.f32 %v829, %v957
        %v998 = vmul.f32 %v830, %v957
        %v999 = vmul.f32 %v831, %v957
        %v1000 = vmul.f32 %v832, %v957
        %v1001 = vmul.f32 %v833, %v957
        %v1002 = vmul.f32 %v834, %v957
        %v1003 = vmul.f32 %v835, %v957
        %v1004 = vmul.f32 %v836, %v957
        %v1005 = vmul.f32 %v837, %v957
        %v1006 = vmul.f32 %v838, %v957
        %v1007 = vmul.f32 %v839, %v957
        %v1008 = vmul.f32 %v840, %v957
        %v1009 = vmul.f32 %v841, %v957
        %v1010 = vmul.f32 %v842, %v962
        %v1011 = vmul.f32 %v843, %v962
        %v1012 = vmul.f32 %v844, %v962
        %v1013 = vmul.f32 %v845, %v962
        %v1014 = vmul.f32 %v846, %v962
        %v1015 = vmul.f32 %v847, %v962
        %v1016 = vmul.f32 %v848, %v962
        %v1017 = vmul.f32 %v849, %v962
        %v1018 = vmul.f32 %v850, %v962
        %v1019 = vmul.f32 %v851, %v962
        %v1020 = vmul.f32 %v852, %v962
        %v1021 = vmul.f32 %v853, %v962
        %v1022 = vmul.f32 %v854, %v962
        %v1023 = vmul.f32 %v855, %v962
        %v1024 = vmul.f32 %v856, %v962
        %v1025 = vmul.f32 %v857, %v962
        %v1026 = vmul.f32 %v858, %v967
        %v1027 = vmul.f32 %v859, %v967
        %v1028 = vmul.f32 %v860, %v967
        %v1029 = vmul.f32 %v861, %v967
        %v1030 = vmul.f32 %v862, %v967
        %v1031 = vmul.f32 %v863, %v967
        %v1032 = vmul.f32 %v864, %v967
        %v1033 = vmul.f32 %v865, %v967
        %v1034 = vmul.f32 %v866, %v967
        %v1035 = vmul.f32 %v867, %v967
        %v1036 = vmul.f32 %v868, %v967
        %v1037 = vmul.f32 %v869, %v967
        %v1038 = vmul.f32 %v870, %v967
        %v1039 = vmul.f32 %v871, %v967
        %v1040 = vmul.f32 %v872, %v967
        %v1041 = vmul.f32 %v873, %v967
        %v1042 = vmul.f32 %v874, %v972
        %v1043 = vmul.f32 %v875, %v972
        %v1044 = vmul.f32 %v876, %v972
        %v1045 = vmul.f32 %v877, %v972
        %v1046 = vmul.f32 %v878, %v972
        %v1047 = vmul.f32 %v879, %v972
        %v1048 = vmul.f32 %v880, %v972
        %v1049 = vmul.f32 %v881, %v972
        %v1050 = vmul.f32 %v882, %v972
        %v1051 = vmul.f32 %v883, %v972
        %v1052 = vmul.f32 %v884, %v972
        %v1053 = vmul.f32 %v885, %v972
        %v1054 = vmul.f32 %v886, %v972
        %v1055 = vmul.f32 %v887, %v972
        %v1056 = vmul.f32 %v888, %v972
        %v1057 = vmul.f32 %v889, %v972
        %v1058 = vmul.f32 %v890, %v977
        %v1059 = vmul.f32 %v891, %v977
        %v1060 = vmul.f32 %v892, %v977
        %v1061 = vmul.f32 %v893, %v977
        %v1062 = vmul.f32 %v894, %v977
        %v1063 = vmul.f32 %v895, %v977
        %v1064 = vmul.f32 %v896, %v977
        %v1065 = vmul.f32 %v897, %v977
        %v1066 = vmul.f32 %v898, %v977
        %v1067 = vmul.f32 %v899, %v977
        %v1068 = vmul.f32 %v900, %v977
        %v1069 = vmul.f32 %v901, %v977
        %v1070 = vmul.f32 %v902, %v977
        %v1071 = vmul.f32 %v903, %v977
        %v1072 = vmul.f32 %v904, %v977
        %v1073 = vmul.f32 %v905, %v977
        %v1074 = vmul.f32 %v906, %v982
        %v1075 = vmul.f32 %v907, %v982
        %v1076 = vmul.f32 %v908, %v982
        %v1077 = vmul.f32 %v909, %v982
        %v1078 = vmul.f32 %v910, %v982
        %v1079 = vmul.f32 %v911, %v982
        %v1080 = vmul.f32 %v912, %v982
        %v1081 = vmul.f32 %v913, %v982
        %v1082 = vmul.f32 %v914, %v982
        %v1083 = vmul.f32 %v915, %v982
        %v1084 = vmul.f32 %v916, %v982
        %v1085 = vmul.f32 %v917, %v982
        %v1086 = vmul.f32 %v918, %v982
        %v1087 = vmul.f32 %v919, %v982
        %v1088 = vmul.f32 %v920, %v982
        %v1089 = vmul.f32 %v921, %v982
        %v1090 = vmul.f32 %v922, %v987
        %v1091 = vmul.f32 %v923, %v987
        %v1092 = vmul.f32 %v924, %v987
        %v1093 = vmul.f32 %v925, %v987
        %v1094 = vmul.f32 %v926, %v987
        %v1095 = vmul.f32 %v927, %v987
        %v1096 = vmul.f32 %v928, %v987
        %v1097 = vmul.f32 %v929, %v987
        %v1098 = vmul.f32 %v930, %v987
        %v1099 = vmul.f32 %v931, %v987
        %v1100 = vmul.f32 %v932, %v987
        %v1101 = vmul.f32 %v933, %v987
        %v1102 = vmul.f32 %v934, %v987
        %v1103 = vmul.f32 %v935, %v987
        %v1104 = vmul.f32 %v936, %v987
        %v1105 = vmul.f32 %v937, %v987
        %v1106 = vmul.f32 %v938, %v992
        %v1107 = vmul.f32 %v939, %v992
        %v1108 = vmul.f32 %v940, %v992
        %v1109 = vmul.f32 %v941, %v992
        %v1110 = vmul.f32 %v942, %v992
        %v1111 = vmul.f32 %v943, %v992
        %v1112 = vmul.f32 %v944, %v992
        %v1113 = vmul.f32 %v945, %v992
        %v1114 = vmul.f32 %v946, %v992
        %v1115 = vmul.f32 %v947, %v992
        %v1116 = vmul.f32 %v948, %v992
        %v1117 = vmul.f32 %v949, %v992
        %v1118 = vmul.f32 %v950, %v992
        %v1119 = vmul.f32 %v951, %v992
        %v1120 = vmul.f32 %v952, %v992
        %v1121 = vmul.f32 %v953, %v992
        %1122 = vst [vmem:[%s500] sm:$0xff] %v994
        %1123 = vst [vmem:[%s500 + $0x8] sm:$0xff] %v995
        %1124 = vst [vmem:[%s500 + $0x10] sm:$0xff] %v996
        %1125 = vst [vmem:[%s500 + $0x18] sm:$0xff] %v997
        %1126 = vst [vmem:[%s500 + $0x20] sm:$0xff] %v998
        %1127 = vst [vmem:[%s500 + $0x28] sm:$0xff] %v999
        %1128 = vst [vmem:[%s500 + $0x30] sm:$0xff] %v1000
        %1129 = vst [vmem:[%s500 + $0x38] sm:$0xff] %v1001
        %1130 = vst [vmem:[%s500 + $0x40] sm:$0xff] %v1002
        %1131 = vst [vmem:[%s500 + $0x48] sm:$0xff] %v1003
        %1132 = vst [vmem:[%s500 + $0x50] sm:$0xff] %v1004
        %1133 = vst [vmem:[%s500 + $0x58] sm:$0xff] %v1005
        %1134 = vst [vmem:[%s500 + $0x60] sm:$0xff] %v1006
        %1135 = vst [vmem:[%s500 + $0x68] sm:$0xff] %v1007
        %1136 = vst [vmem:[%s500 + $0x70] sm:$0xff] %v1008
        %1137 = vst [vmem:[%s500 + $0x78] sm:$0xff] %v1009
        %1138 = vst [vmem:[%s500 + $0x80] sm:$0xff] %v1010
        %1139 = vst [vmem:[%s500 + $0x88] sm:$0xff] %v1011
        %1140 = vst [vmem:[%s500 + $0x90] sm:$0xff] %v1012
        %1141 = vst [vmem:[%s500 + $0x98] sm:$0xff] %v1013
        %1142 = vst [vmem:[%s500 + $0xa0] sm:$0xff] %v1014
        %1143 = vst [vmem:[%s500 + $0xa8] sm:$0xff] %v1015
        %1144 = vst [vmem:[%s500 + $0xb0] sm:$0xff] %v1016
        %1145 = vst [vmem:[%s500 + $0xb8] sm:$0xff] %v1017
        %1146 = vst [vmem:[%s500 + $0xc0] sm:$0xff] %v1018
        %1147 = vst [vmem:[%s500 + $0xc8] sm:$0xff] %v1019
        %1148 = vst [vmem:[%s500 + $0xd0] sm:$0xff] %v1020
        %1149 = vst [vmem:[%s500 + $0xd8] sm:$0xff] %v1021
        %1150 = vst [vmem:[%s500 + $0xe0] sm:$0xff] %v1022
        %1151 = vst [vmem:[%s500 + $0xe8] sm:$0xff] %v1023
        %1152 = vst [vmem:[%s500 + $0xf0] sm:$0xff] %v1024
        %1153 = vst [vmem:[%s500 + $0xf8] sm:$0xff] %v1025
        %1154 = vst [vmem:[%s500 + $0x100] sm:$0xff] %v1026
        %1155 = vst [vmem:[%s500 + $0x108] sm:$0xff] %v1027
        %1156 = vst [vmem:[%s500 + $0x110] sm:$0xff] %v1028
        %1157 = vst [vmem:[%s500 + $0x118] sm:$0xff] %v1029
        %1158 = vst [vmem:[%s500 + $0x120] sm:$0xff] %v1030
        %1159 = vst [vmem:[%s500 + $0x128] sm:$0xff] %v1031
        %1160 = vst [vmem:[%s500 + $0x130] sm:$0xff] %v1032
        %1161 = vst [vmem:[%s500 + $0x138] sm:$0xff] %v1033
        %1162 = vst [vmem:[%s500 + $0x140] sm:$0xff] %v1034
        %1163 = vst [vmem:[%s500 + $0x148] sm:$0xff] %v1035
        %1164 = vst [vmem:[%s500 + $0x150] sm:$0xff] %v1036
        %1165 = vst [vmem:[%s500 + $0x158] sm:$0xff] %v1037
        %1166 = vst [vmem:[%s500 + $0x160] sm:$0xff] %v1038
        %1167 = vst [vmem:[%s500 + $0x168] sm:$0xff] %v1039
        %1168 = vst [vmem:[%s500 + $0x170] sm:$0xff] %v1040
        %1169 = vst [vmem:[%s500 + $0x178] sm:$0xff] %v1041
        %1170 = vst [vmem:[%s500 + $0x180] sm:$0xff] %v1042
        %1171 = vst [vmem:[%s500 + $0x188] sm:$0xff] %v1043
        %1172 = vst [vmem:[%s500 + $0x190] sm:$0xff] %v1044
        %1173 = vst [vmem:[%s500 + $0x198] sm:$0xff] %v1045
        %1174 = vst [vmem:[%s500 + $0x1a0] sm:$0xff] %v1046
        %1175 = vst [vmem:[%s500 + $0x1a8] sm:$0xff] %v1047
        %1176 = vst [vmem:[%s500 + $0x1b0] sm:$0xff] %v1048
        %1177 = vst [vmem:[%s500 + $0x1b8] sm:$0xff] %v1049
        %1178 = vst [vmem:[%s500 + $0x1c0] sm:$0xff] %v1050
        %1179 = vst [vmem:[%s500 + $0x1c8] sm:$0xff] %v1051
        %1180 = vst [vmem:[%s500 + $0x1d0] sm:$0xff] %v1052
        %1181 = vst [vmem:[%s500 + $0x1d8] sm:$0xff] %v1053
        %1182 = vst [vmem:[%s500 + $0x1e0] sm:$0xff] %v1054
        %1183 = vst [vmem:[%s500 + $0x1e8] sm:$0xff] %v1055
        %1184 = vst [vmem:[%s500 + $0x1f0] sm:$0xff] %v1056
        %1185 = vst [vmem:[%s500 + $0x1f8] sm:$0xff] %v1057
        %1186 = vst [vmem:[%s500 + $0x200] sm:$0xff] %v1058
        %1187 = vst [vmem:[%s500 + $0x208] sm:$0xff] %v1059
        %1188 = vst [vmem:[%s500 + $0x210] sm:$0xff] %v1060
        %1189 = vst [vmem:[%s500 + $0x218] sm:$0xff] %v1061
        %1190 = vst [vmem:[%s500 + $0x220] sm:$0xff] %v1062
        %1191 = vst [vmem:[%s500 + $0x228] sm:$0xff] %v1063
        %1192 = vst [vmem:[%s500 + $0x230] sm:$0xff] %v1064
        %1193 = vst [vmem:[%s500 + $0x238] sm:$0xff] %v1065
        %1194 = vst [vmem:[%s500 + $0x240] sm:$0xff] %v1066
        %1195 = vst [vmem:[%s500 + $0x248] sm:$0xff] %v1067
        %1196 = vst [vmem:[%s500 + $0x250] sm:$0xff] %v1068
        %1197 = vst [vmem:[%s500 + $0x258] sm:$0xff] %v1069
        %1198 = vst [vmem:[%s500 + $0x260] sm:$0xff] %v1070
        %1199 = vst [vmem:[%s500 + $0x268] sm:$0xff] %v1071
        %1200 = vst [vmem:[%s500 + $0x270] sm:$0xff] %v1072
        %1201 = vst [vmem:[%s500 + $0x278] sm:$0xff] %v1073
        %1202 = vst [vmem:[%s500 + $0x280] sm:$0xff] %v1074
        %1203 = vst [vmem:[%s500 + $0x288] sm:$0xff] %v1075
        %1204 = vst [vmem:[%s500 + $0x290] sm:$0xff] %v1076
        %1205 = vst [vmem:[%s500 + $0x298] sm:$0xff] %v1077
        %1206 = vst [vmem:[%s500 + $0x2a0] sm:$0xff] %v1078
        %1207 = vst [vmem:[%s500 + $0x2a8] sm:$0xff] %v1079
        %1208 = vst [vmem:[%s500 + $0x2b0] sm:$0xff] %v1080
        %1209 = vst [vmem:[%s500 + $0x2b8] sm:$0xff] %v1081
        %1210 = vst [vmem:[%s500 + $0x2c0] sm:$0xff] %v1082
        %1211 = vst [vmem:[%s500 + $0x2c8] sm:$0xff] %v1083
        %1212 = vst [vmem:[%s500 + $0x2d0] sm:$0xff] %v1084
        %1213 = vst [vmem:[%s500 + $0x2d8] sm:$0xff] %v1085
        %1214 = vst [vmem:[%s500 + $0x2e0] sm:$0xff] %v1086
        %1215 = vst [vmem:[%s500 + $0x2e8] sm:$0xff] %v1087
        %1216 = vst [vmem:[%s500 + $0x2f0] sm:$0xff] %v1088
        %1217 = vst [vmem:[%s500 + $0x2f8] sm:$0xff] %v1089
        %1218 = vst [vmem:[%s500 + $0x300] sm:$0xff] %v1090
        %1219 = vst [vmem:[%s500 + $0x308] sm:$0xff] %v1091
        %1220 = vst [vmem:[%s500 + $0x310] sm:$0xff] %v1092
        %1221 = vst [vmem:[%s500 + $0x318] sm:$0xff] %v1093
        %1222 = vst [vmem:[%s500 + $0x320] sm:$0xff] %v1094
        %1223 = vst [vmem:[%s500 + $0x328] sm:$0xff] %v1095
        %1224 = vst [vmem:[%s500 + $0x330] sm:$0xff] %v1096
        %1225 = vst [vmem:[%s500 + $0x338] sm:$0xff] %v1097
        %1226 = vst [vmem:[%s500 + $0x340] sm:$0xff] %v1098
        %1227 = vst [vmem:[%s500 + $0x348] sm:$0xff] %v1099
        %1228 = vst [vmem:[%s500 + $0x350] sm:$0xff] %v1100
        %1229 = vst [vmem:[%s500 + $0x358] sm:$0xff] %v1101
        %1230 = vst [vmem:[%s500 + $0x360] sm:$0xff] %v1102
        %1231 = vst [vmem:[%s500 + $0x368] sm:$0xff] %v1103
        %1232 = vst [vmem:[%s500 + $0x370] sm:$0xff] %v1104
        %1233 = vst [vmem:[%s500 + $0x378] sm:$0xff] %v1105
        %1234 = vst [vmem:[%s500 + $0x380] sm:$0xff] %v1106
        %1235 = vst [vmem:[%s500 + $0x388] sm:$0xff] %v1107
        %1236 = vst [vmem:[%s500 + $0x390] sm:$0xff] %v1108
        %1237 = vst [vmem:[%s500 + $0x398] sm:$0xff] %v1109
        %1238 = vst [vmem:[%s500 + $0x3a0] sm:$0xff] %v1110
        %1239 = vst [vmem:[%s500 + $0x3a8] sm:$0xff] %v1111
        %1240 = vst [vmem:[%s500 + $0x3b0] sm:$0xff] %v1112
        %1241 = vst [vmem:[%s500 + $0x3b8] sm:$0xff] %v1113
        %1242 = vst [vmem:[%s500 + $0x3c0] sm:$0xff] %v1114
        %1243 = vst [vmem:[%s500 + $0x3c8] sm:$0xff] %v1115
        %1244 = vst [vmem:[%s500 + $0x3d0] sm:$0xff] %v1116
        %1245 = vst [vmem:[%s500 + $0x3d8] sm:$0xff] %v1117
        %1246 = vst [vmem:[%s500 + $0x3e0] sm:$0xff] %v1118
        %1247 = vst [vmem:[%s500 + $0x3e8] sm:$0xff] %v1119
        %1248 = vst [vmem:[%s500 + $0x3f0] sm:$0xff] %v1120
        %1249 = vst [vmem:[%s500 + $0x3f8] sm:$0xff] %v1121
        %s1250 = sand.u32 %s133, 1
        %s1251 = sand.u32 %s133, 1
        %s1252 = smul.addr %s1251, 1024
        %s1253 = scalar_lea.vmem [#allocation3], %s1252
        // Predicated region
        $region60: #{channel_attention_pallas.3} parent=54 // pred_check
          %p1254 = pneg %p143
        $region61: #{channel_attention_pallas.3} parent=54 // pred_check_branch
          %1256 = sbr.rel (%p1254) target = $region63
        $region62: #{channel_attention_pallas.3} parent=54 // pred_region
          %s1257 = smul.u32 8, %s19
          %s1258 = smul.u32 16, %s20
          %s1259 = smul.addr %s1257, 32
          %s1260 = sadd.s32 %s1258, %s1259
          %s1261 = smul.addr %s1260, 8
          %s1262 = scalar_lea.vmem %s4, %s1261
          // Predicated region
          $region64: #{channel_attention_pallas.3} parent=62 // pred_check
            _
          $region65: #{channel_attention_pallas.3} parent=62 // pred_check_branch
            %1264 = sbr.rel (0) target = $region67
          $region66: #{channel_attention_pallas.3} parent=62 // pred_region
            // Predicated region
            $region68: #{channel_attention_pallas.3} parent=66 // pred_check
              _
            $region69: #{channel_attention_pallas.3} parent=66 // pred_check_branch
              %1266 = sbr.rel (0) target = $region71
            $region70: #{channel_attention_pallas.3} parent=66 // pred_region
              loop: start=0, step=1, limit=1
              $region72: #{channel_attention_pallas.3} parent=70 // loop_pre_header
                _
              $region73: #{channel_attention_pallas.3} parent=70 // loop_header
                %s1268 = sphi 0, %s1272
                %p1269 = scmp.ge.s32.totalorder %s1268, 1
                %s1273 = sphi %s1253, %s1253
                %s1274 = sphi %s1262, %s1262
              $region74: #{channel_attention_pallas.3} parent=70 // loop_header_branch
                %1271 = sbr.rel (%p1269) target = $region78
              $region75: #{channel_attention_pallas.3} parent=70 // loop_body
                %v1275 = vld [vmem:[%s1273] sm:$0xff]
                %1276 = vst [vmem:[%s1274] sm:$0xff] %v1275
                %v1277 = vld [vmem:[%s1273 + $0x8] sm:$0xff]
                %1278 = vst [vmem:[%s1274 + $0x8] sm:$0xff] %v1277
                %v1279 = vld [vmem:[%s1273 + $0x10] sm:$0xff]
                %1280 = vst [vmem:[%s1274 + $0x10] sm:$0xff] %v1279
                %v1281 = vld [vmem:[%s1273 + $0x18] sm:$0xff]
                %1282 = vst [vmem:[%s1274 + $0x18] sm:$0xff] %v1281
                %v1283 = vld [vmem:[%s1273 + $0x20] sm:$0xff]
                %1284 = vst [vmem:[%s1274 + $0x20] sm:$0xff] %v1283
                %v1285 = vld [vmem:[%s1273 + $0x28] sm:$0xff]
                %1286 = vst [vmem:[%s1274 + $0x28] sm:$0xff] %v1285
                %v1287 = vld [vmem:[%s1273 + $0x30] sm:$0xff]
                %1288 = vst [vmem:[%s1274 + $0x30] sm:$0xff] %v1287
                %v1289 = vld [vmem:[%s1273 + $0x38] sm:$0xff]
                %1290 = vst [vmem:[%s1274 + $0x38] sm:$0xff] %v1289
                %v1291 = vld [vmem:[%s1273 + $0x40] sm:$0xff]
                %1292 = vst [vmem:[%s1274 + $0x40] sm:$0xff] %v1291
                %v1293 = vld [vmem:[%s1273 + $0x48] sm:$0xff]
                %1294 = vst [vmem:[%s1274 + $0x48] sm:$0xff] %v1293
                %v1295 = vld [vmem:[%s1273 + $0x50] sm:$0xff]
                %1296 = vst [vmem:[%s1274 + $0x50] sm:$0xff] %v1295
                %v1297 = vld [vmem:[%s1273 + $0x58] sm:$0xff]
                %1298 = vst [vmem:[%s1274 + $0x58] sm:$0xff] %v1297
                %v1299 = vld [vmem:[%s1273 + $0x60] sm:$0xff]
                %1300 = vst [vmem:[%s1274 + $0x60] sm:$0xff] %v1299
                %v1301 = vld [vmem:[%s1273 + $0x68] sm:$0xff]
                %1302 = vst [vmem:[%s1274 + $0x68] sm:$0xff] %v1301
                %v1303 = vld [vmem:[%s1273 + $0x70] sm:$0xff]
                %1304 = vst [vmem:[%s1274 + $0x70] sm:$0xff] %v1303
                %v1305 = vld [vmem:[%s1273 + $0x78] sm:$0xff]
                %1306 = vst [vmem:[%s1274 + $0x78] sm:$0xff] %v1305
                %v1307 = vld [vmem:[%s1273 + $0x80] sm:$0xff]
                %1308 = vst [vmem:[%s1274 + $0x100] sm:$0xff] %v1307
                %v1309 = vld [vmem:[%s1273 + $0x88] sm:$0xff]
                %1310 = vst [vmem:[%s1274 + $0x108] sm:$0xff] %v1309
                %v1311 = vld [vmem:[%s1273 + $0x90] sm:$0xff]
                %1312 = vst [vmem:[%s1274 + $0x110] sm:$0xff] %v1311
                %v1313 = vld [vmem:[%s1273 + $0x98] sm:$0xff]
                %1314 = vst [vmem:[%s1274 + $0x118] sm:$0xff] %v1313
                %v1315 = vld [vmem:[%s1273 + $0xa0] sm:$0xff]
                %1316 = vst [vmem:[%s1274 + $0x120] sm:$0xff] %v1315
                %v1317 = vld [vmem:[%s1273 + $0xa8] sm:$0xff]
                %1318 = vst [vmem:[%s1274 + $0x128] sm:$0xff] %v1317
                %v1319 = vld [vmem:[%s1273 + $0xb0] sm:$0xff]
                %1320 = vst [vmem:[%s1274 + $0x130] sm:$0xff] %v1319
                %v1321 = vld [vmem:[%s1273 + $0xb8] sm:$0xff]
                %1322 = vst [vmem:[%s1274 + $0x138] sm:$0xff] %v1321
                %v1323 = vld [vmem:[%s1273 + $0xc0] sm:$0xff]
                %1324 = vst [vmem:[%s1274 + $0x140] sm:$0xff] %v1323
                %v1325 = vld [vmem:[%s1273 + $0xc8] sm:$0xff]
                %1326 = vst [vmem:[%s1274 + $0x148] sm:$0xff] %v1325
                %v1327 = vld [vmem:[%s1273 + $0xd0] sm:$0xff]
                %1328 = vst [vmem:[%s1274 + $0x150] sm:$0xff] %v1327
                %v1329 = vld [vmem:[%s1273 + $0xd8] sm:$0xff]
                %1330 = vst [vmem:[%s1274 + $0x158] sm:$0xff] %v1329
                %v1331 = vld [vmem:[%s1273 + $0xe0] sm:$0xff]
                %1332 = vst [vmem:[%s1274 + $0x160] sm:$0xff] %v1331
                %v1333 = vld [vmem:[%s1273 + $0xe8] sm:$0xff]
                %1334 = vst [vmem:[%s1274 + $0x168] sm:$0xff] %v1333
                %v1335 = vld [vmem:[%s1273 + $0xf0] sm:$0xff]
                %1336 = vst [vmem:[%s1274 + $0x170] sm:$0xff] %v1335
                %v1337 = vld [vmem:[%s1273 + $0xf8] sm:$0xff]
                %1338 = vst [vmem:[%s1274 + $0x178] sm:$0xff] %v1337
                %v1339 = vld [vmem:[%s1273 + $0x100] sm:$0xff]
                %1340 = vst [vmem:[%s1274 + $0x200] sm:$0xff] %v1339
                %v1341 = vld [vmem:[%s1273 + $0x108] sm:$0xff]
                %1342 = vst [vmem:[%s1274 + $0x208] sm:$0xff] %v1341
                %v1343 = vld [vmem:[%s1273 + $0x110] sm:$0xff]
                %1344 = vst [vmem:[%s1274 + $0x210] sm:$0xff] %v1343
                %v1345 = vld [vmem:[%s1273 + $0x118] sm:$0xff]
                %1346 = vst [vmem:[%s1274 + $0x218] sm:$0xff] %v1345
                %v1347 = vld [vmem:[%s1273 + $0x120] sm:$0xff]
                %1348 = vst [vmem:[%s1274 + $0x220] sm:$0xff] %v1347
                %v1349 = vld [vmem:[%s1273 + $0x128] sm:$0xff]
                %1350 = vst [vmem:[%s1274 + $0x228] sm:$0xff] %v1349
                %v1351 = vld [vmem:[%s1273 + $0x130] sm:$0xff]
                %1352 = vst [vmem:[%s1274 + $0x230] sm:$0xff] %v1351
                %v1353 = vld [vmem:[%s1273 + $0x138] sm:$0xff]
                %1354 = vst [vmem:[%s1274 + $0x238] sm:$0xff] %v1353
                %v1355 = vld [vmem:[%s1273 + $0x140] sm:$0xff]
                %1356 = vst [vmem:[%s1274 + $0x240] sm:$0xff] %v1355
                %v1357 = vld [vmem:[%s1273 + $0x148] sm:$0xff]
                %1358 = vst [vmem:[%s1274 + $0x248] sm:$0xff] %v1357
                %v1359 = vld [vmem:[%s1273 + $0x150] sm:$0xff]
                %1360 = vst [vmem:[%s1274 + $0x250] sm:$0xff] %v1359
                %v1361 = vld [vmem:[%s1273 + $0x158] sm:$0xff]
                %1362 = vst [vmem:[%s1274 + $0x258] sm:$0xff] %v1361
                %v1363 = vld [vmem:[%s1273 + $0x160] sm:$0xff]
                %1364 = vst [vmem:[%s1274 + $0x260] sm:$0xff] %v1363
                %v1365 = vld [vmem:[%s1273 + $0x168] sm:$0xff]
                %1366 = vst [vmem:[%s1274 + $0x268] sm:$0xff] %v1365
                %v1367 = vld [vmem:[%s1273 + $0x170] sm:$0xff]
                %1368 = vst [vmem:[%s1274 + $0x270] sm:$0xff] %v1367
                %v1369 = vld [vmem:[%s1273 + $0x178] sm:$0xff]
                %1370 = vst [vmem:[%s1274 + $0x278] sm:$0xff] %v1369
                %v1371 = vld [vmem:[%s1273 + $0x180] sm:$0xff]
                %1372 = vst [vmem:[%s1274 + $0x300] sm:$0xff] %v1371
                %v1373 = vld [vmem:[%s1273 + $0x188] sm:$0xff]
                %1374 = vst [vmem:[%s1274 + $0x308] sm:$0xff] %v1373
                %v1375 = vld [vmem:[%s1273 + $0x190] sm:$0xff]
                %1376 = vst [vmem:[%s1274 + $0x310] sm:$0xff] %v1375
                %v1377 = vld [vmem:[%s1273 + $0x198] sm:$0xff]
                %1378 = vst [vmem:[%s1274 + $0x318] sm:$0xff] %v1377
                %v1379 = vld [vmem:[%s1273 + $0x1a0] sm:$0xff]
                %1380 = vst [vmem:[%s1274 + $0x320] sm:$0xff] %v1379
                %v1381 = vld [vmem:[%s1273 + $0x1a8] sm:$0xff]
                %1382 = vst [vmem:[%s1274 + $0x328] sm:$0xff] %v1381
                %v1383 = vld [vmem:[%s1273 + $0x1b0] sm:$0xff]
                %1384 = vst [vmem:[%s1274 + $0x330] sm:$0xff] %v1383
                %v1385 = vld [vmem:[%s1273 + $0x1b8] sm:$0xff]
                %1386 = vst [vmem:[%s1274 + $0x338] sm:$0xff] %v1385
                %v1387 = vld [vmem:[%s1273 + $0x1c0] sm:$0xff]
                %1388 = vst [vmem:[%s1274 + $0x340] sm:$0xff] %v1387
                %v1389 = vld [vmem:[%s1273 + $0x1c8] sm:$0xff]
                %1390 = vst [vmem:[%s1274 + $0x348] sm:$0xff] %v1389
                %v1391 = vld [vmem:[%s1273 + $0x1d0] sm:$0xff]
                %1392 = vst [vmem:[%s1274 + $0x350] sm:$0xff] %v1391
                %v1393 = vld [vmem:[%s1273 + $0x1d8] sm:$0xff]
                %1394 = vst [vmem:[%s1274 + $0x358] sm:$0xff] %v1393
                %v1395 = vld [vmem:[%s1273 + $0x1e0] sm:$0xff]
                %1396 = vst [vmem:[%s1274 + $0x360] sm:$0xff] %v1395
                %v1397 = vld [vmem:[%s1273 + $0x1e8] sm:$0xff]
                %1398 = vst [vmem:[%s1274 + $0x368] sm:$0xff] %v1397
                %v1399 = vld [vmem:[%s1273 + $0x1f0] sm:$0xff]
                %1400 = vst [vmem:[%s1274 + $0x370] sm:$0xff] %v1399
                %v1401 = vld [vmem:[%s1273 + $0x1f8] sm:$0xff]
                %1402 = vst [vmem:[%s1274 + $0x378] sm:$0xff] %v1401
                %v1403 = vld [vmem:[%s1273 + $0x200] sm:$0xff]
                %1404 = vst [vmem:[%s1274 + $0x400] sm:$0xff] %v1403
                %v1405 = vld [vmem:[%s1273 + $0x208] sm:$0xff]
                %1406 = vst [vmem:[%s1274 + $0x408] sm:$0xff] %v1405
                %v1407 = vld [vmem:[%s1273 + $0x210] sm:$0xff]
                %1408 = vst [vmem:[%s1274 + $0x410] sm:$0xff] %v1407
                %v1409 = vld [vmem:[%s1273 + $0x218] sm:$0xff]
                %1410 = vst [vmem:[%s1274 + $0x418] sm:$0xff] %v1409
                %v1411 = vld [vmem:[%s1273 + $0x220] sm:$0xff]
                %1412 = vst [vmem:[%s1274 + $0x420] sm:$0xff] %v1411
                %v1413 = vld [vmem:[%s1273 + $0x228] sm:$0xff]
                %1414 = vst [vmem:[%s1274 + $0x428] sm:$0xff] %v1413
                %v1415 = vld [vmem:[%s1273 + $0x230] sm:$0xff]
                %1416 = vst [vmem:[%s1274 + $0x430] sm:$0xff] %v1415
                %v1417 = vld [vmem:[%s1273 + $0x238] sm:$0xff]
                %1418 = vst [vmem:[%s1274 + $0x438] sm:$0xff] %v1417
                %v1419 = vld [vmem:[%s1273 + $0x240] sm:$0xff]
                %1420 = vst [vmem:[%s1274 + $0x440] sm:$0xff] %v1419
                %v1421 = vld [vmem:[%s1273 + $0x248] sm:$0xff]
                %1422 = vst [vmem:[%s1274 + $0x448] sm:$0xff] %v1421
                %v1423 = vld [vmem:[%s1273 + $0x250] sm:$0xff]
                %1424 = vst [vmem:[%s1274 + $0x450] sm:$0xff] %v1423
                %v1425 = vld [vmem:[%s1273 + $0x258] sm:$0xff]
                %1426 = vst [vmem:[%s1274 + $0x458] sm:$0xff] %v1425
                %v1427 = vld [vmem:[%s1273 + $0x260] sm:$0xff]
                %1428 = vst [vmem:[%s1274 + $0x460] sm:$0xff] %v1427
                %v1429 = vld [vmem:[%s1273 + $0x268] sm:$0xff]
                %1430 = vst [vmem:[%s1274 + $0x468] sm:$0xff] %v1429
                %v1431 = vld [vmem:[%s1273 + $0x270] sm:$0xff]
                %1432 = vst [vmem:[%s1274 + $0x470] sm:$0xff] %v1431
                %v1433 = vld [vmem:[%s1273 + $0x278] sm:$0xff]
                %1434 = vst [vmem:[%s1274 + $0x478] sm:$0xff] %v1433
                %v1435 = vld [vmem:[%s1273 + $0x280] sm:$0xff]
                %1436 = vst [vmem:[%s1274 + $0x500] sm:$0xff] %v1435
                %v1437 = vld [vmem:[%s1273 + $0x288] sm:$0xff]
                %1438 = vst [vmem:[%s1274 + $0x508] sm:$0xff] %v1437
                %v1439 = vld [vmem:[%s1273 + $0x290] sm:$0xff]
                %1440 = vst [vmem:[%s1274 + $0x510] sm:$0xff] %v1439
                %v1441 = vld [vmem:[%s1273 + $0x298] sm:$0xff]
                %1442 = vst [vmem:[%s1274 + $0x518] sm:$0xff] %v1441
                %v1443 = vld [vmem:[%s1273 + $0x2a0] sm:$0xff]
                %1444 = vst [vmem:[%s1274 + $0x520] sm:$0xff] %v1443
                %v1445 = vld [vmem:[%s1273 + $0x2a8] sm:$0xff]
                %1446 = vst [vmem:[%s1274 + $0x528] sm:$0xff] %v1445
                %v1447 = vld [vmem:[%s1273 + $0x2b0] sm:$0xff]
                %1448 = vst [vmem:[%s1274 + $0x530] sm:$0xff] %v1447
                %v1449 = vld [vmem:[%s1273 + $0x2b8] sm:$0xff]
                %1450 = vst [vmem:[%s1274 + $0x538] sm:$0xff] %v1449
                %v1451 = vld [vmem:[%s1273 + $0x2c0] sm:$0xff]
                %1452 = vst [vmem:[%s1274 + $0x540] sm:$0xff] %v1451
                %v1453 = vld [vmem:[%s1273 + $0x2c8] sm:$0xff]
                %1454 = vst [vmem:[%s1274 + $0x548] sm:$0xff] %v1453
                %v1455 = vld [vmem:[%s1273 + $0x2d0] sm:$0xff]
                %1456 = vst [vmem:[%s1274 + $0x550] sm:$0xff] %v1455
                %v1457 = vld [vmem:[%s1273 + $0x2d8] sm:$0xff]
                %1458 = vst [vmem:[%s1274 + $0x558] sm:$0xff] %v1457
                %v1459 = vld [vmem:[%s1273 + $0x2e0] sm:$0xff]
                %1460 = vst [vmem:[%s1274 + $0x560] sm:$0xff] %v1459
                %v1461 = vld [vmem:[%s1273 + $0x2e8] sm:$0xff]
                %1462 = vst [vmem:[%s1274 + $0x568] sm:$0xff] %v1461
                %v1463 = vld [vmem:[%s1273 + $0x2f0] sm:$0xff]
                %1464 = vst [vmem:[%s1274 + $0x570] sm:$0xff] %v1463
                %v1465 = vld [vmem:[%s1273 + $0x2f8] sm:$0xff]
                %1466 = vst [vmem:[%s1274 + $0x578] sm:$0xff] %v1465
                %v1467 = vld [vmem:[%s1273 + $0x300] sm:$0xff]
                %1468 = vst [vmem:[%s1274 + $0x600] sm:$0xff] %v1467
                %v1469 = vld [vmem:[%s1273 + $0x308] sm:$0xff]
                %1470 = vst [vmem:[%s1274 + $0x608] sm:$0xff] %v1469
                %v1471 = vld [vmem:[%s1273 + $0x310] sm:$0xff]
                %1472 = vst [vmem:[%s1274 + $0x610] sm:$0xff] %v1471
                %v1473 = vld [vmem:[%s1273 + $0x318] sm:$0xff]
                %1474 = vst [vmem:[%s1274 + $0x618] sm:$0xff] %v1473
                %v1475 = vld [vmem:[%s1273 + $0x320] sm:$0xff]
                %1476 = vst [vmem:[%s1274 + $0x620] sm:$0xff] %v1475
                %v1477 = vld [vmem:[%s1273 + $0x328] sm:$0xff]
                %1478 = vst [vmem:[%s1274 + $0x628] sm:$0xff] %v1477
                %v1479 = vld [vmem:[%s1273 + $0x330] sm:$0xff]
                %1480 = vst [vmem:[%s1274 + $0x630] sm:$0xff] %v1479
                %v1481 = vld [vmem:[%s1273 + $0x338] sm:$0xff]
                %1482 = vst [vmem:[%s1274 + $0x638] sm:$0xff] %v1481
                %v1483 = vld [vmem:[%s1273 + $0x340] sm:$0xff]
                %1484 = vst [vmem:[%s1274 + $0x640] sm:$0xff] %v1483
                %v1485 = vld [vmem:[%s1273 + $0x348] sm:$0xff]
                %1486 = vst [vmem:[%s1274 + $0x648] sm:$0xff] %v1485
                %v1487 = vld [vmem:[%s1273 + $0x350] sm:$0xff]
                %1488 = vst [vmem:[%s1274 + $0x650] sm:$0xff] %v1487
                %v1489 = vld [vmem:[%s1273 + $0x358] sm:$0xff]
                %1490 = vst [vmem:[%s1274 + $0x658] sm:$0xff] %v1489
                %v1491 = vld [vmem:[%s1273 + $0x360] sm:$0xff]
                %1492 = vst [vmem:[%s1274 + $0x660] sm:$0xff] %v1491
                %v1493 = vld [vmem:[%s1273 + $0x368] sm:$0xff]
                %1494 = vst [vmem:[%s1274 + $0x668] sm:$0xff] %v1493
                %v1495 = vld [vmem:[%s1273 + $0x370] sm:$0xff]
                %1496 = vst [vmem:[%s1274 + $0x670] sm:$0xff] %v1495
                %v1497 = vld [vmem:[%s1273 + $0x378] sm:$0xff]
                %1498 = vst [vmem:[%s1274 + $0x678] sm:$0xff] %v1497
                %v1499 = vld [vmem:[%s1273 + $0x380] sm:$0xff]
                %1500 = vst [vmem:[%s1274 + $0x700] sm:$0xff] %v1499
                %v1501 = vld [vmem:[%s1273 + $0x388] sm:$0xff]
                %1502 = vst [vmem:[%s1274 + $0x708] sm:$0xff] %v1501
                %v1503 = vld [vmem:[%s1273 + $0x390] sm:$0xff]
                %1504 = vst [vmem:[%s1274 + $0x710] sm:$0xff] %v1503
                %v1505 = vld [vmem:[%s1273 + $0x398] sm:$0xff]
                %1506 = vst [vmem:[%s1274 + $0x718] sm:$0xff] %v1505
                %v1507 = vld [vmem:[%s1273 + $0x3a0] sm:$0xff]
                %1508 = vst [vmem:[%s1274 + $0x720] sm:$0xff] %v1507
                %v1509 = vld [vmem:[%s1273 + $0x3a8] sm:$0xff]
                %1510 = vst [vmem:[%s1274 + $0x728] sm:$0xff] %v1509
                %v1511 = vld [vmem:[%s1273 + $0x3b0] sm:$0xff]
                %1512 = vst [vmem:[%s1274 + $0x730] sm:$0xff] %v1511
                %v1513 = vld [vmem:[%s1273 + $0x3b8] sm:$0xff]
                %1514 = vst [vmem:[%s1274 + $0x738] sm:$0xff] %v1513
                %v1515 = vld [vmem:[%s1273 + $0x3c0] sm:$0xff]
                %1516 = vst [vmem:[%s1274 + $0x740] sm:$0xff] %v1515
                %v1517 = vld [vmem:[%s1273 + $0x3c8] sm:$0xff]
                %1518 = vst [vmem:[%s1274 + $0x748] sm:$0xff] %v1517
                %v1519 = vld [vmem:[%s1273 + $0x3d0] sm:$0xff]
                %1520 = vst [vmem:[%s1274 + $0x750] sm:$0xff] %v1519
                %v1521 = vld [vmem:[%s1273 + $0x3d8] sm:$0xff]
                %1522 = vst [vmem:[%s1274 + $0x758] sm:$0xff] %v1521
                %v1523 = vld [vmem:[%s1273 + $0x3e0] sm:$0xff]
                %1524 = vst [vmem:[%s1274 + $0x760] sm:$0xff] %v1523
                %v1525 = vld [vmem:[%s1273 + $0x3e8] sm:$0xff]
                %1526 = vst [vmem:[%s1274 + $0x768] sm:$0xff] %v1525
                %v1527 = vld [vmem:[%s1273 + $0x3f0] sm:$0xff]
                %1528 = vst [vmem:[%s1274 + $0x770] sm:$0xff] %v1527
                %v1529 = vld [vmem:[%s1273 + $0x3f8] sm:$0xff]
                %1530 = vst [vmem:[%s1274 + $0x778] sm:$0xff] %v1529
              $region76: #{channel_attention_pallas.3} parent=70 // loop_footer
                %s1272 = sadd.s32 1, %s1268
              $region77: #{channel_attention_pallas.3} parent=70 // loop_footer_branch
                %1267 = sbr.rel target = $region73
              $region78: #{channel_attention_pallas.3} parent=70 // loop_exit
                _
            $region71: #{channel_attention_pallas.3} parent=66 // pred_fallthru
              _
            // Predicated region
            $region79: #{channel_attention_pallas.3} parent=66 // pred_check
              _
            $region80: #{channel_attention_pallas.3} parent=66 // pred_check_branch
              %1532 = sbr.rel target = $region82
            $region81: #{channel_attention_pallas.3} parent=66 // pred_region
              _
            $region82: #{channel_attention_pallas.3} parent=66 // pred_fallthru
              _
          $region67: #{channel_attention_pallas.3} parent=62 // pred_fallthru
            _
          %1533 = vnop
        $region63: #{channel_attention_pallas.3} parent=54 // pred_fallthru
          _
      $region55: #{channel_attention_pallas.3} parent=5 // pred_fallthru
        _
      %p1534 = scmp.le.s32.totalorder 2, %s10
      // Predicated region
      $region83: #{channel_attention_pallas.3} parent=5 // pred_check
        %p1535 = pneg %p1534
      $region84: #{channel_attention_pallas.3} parent=5 // pred_check_branch
        %1537 = sbr.rel (%p1535) target = $region86
      $region85: #{channel_attention_pallas.3} parent=5 // pred_region
        %s1538 = ssub.s32 %s10, 2
        // Predicated region
        $region87: #{channel_attention_pallas.3} parent=85 // pred_check
          %p1539 = pneg %p149
        $region88: #{channel_attention_pallas.3} parent=85 // pred_check_branch
          %1541 = sbr.rel (%p1539) target = $region90
        $region89: #{channel_attention_pallas.3} parent=85 // pred_region
          %s1542 = sand.u32 %s134, 1
          %s1543 = sand.u32 %s134, 1
          %s1544 = smul.addr %s1543, 1024
          %s1545 = scalar_lea.vmem [#allocation3], %s1544
        $region90: #{channel_attention_pallas.3} parent=85 // pred_fallthru
          _
      $region86: #{channel_attention_pallas.3} parent=5 // pred_fallthru
        _
    $region6: #{channel_attention_pallas.3} parent=1 // loop_footer
      %s14 = sadd.s32 1, %s10
    $region7: #{channel_attention_pallas.3} parent=1 // loop_footer_branch
      %9 = sbr.rel target = $region3
    $region8: #{channel_attention_pallas.3} parent=1 // loop_exit
      _

</llo_original>
